<compile_context>
chip_gen: v5e
topology: v5e:2x2
jax: 0.10.0
libtpu: 0.0.40
codegen_flags: <defaults>
</compile_context>

<pallas_src>
import functools

import jax
import jax.numpy as jnp
from jax.experimental import pallas as pl
from jax.experimental.pallas import tpu as pltpu

NEG_SLOPE = 0.2
BN_EPS = 1e-5
_LANE = 128
_TILE_M = 512                       # rows per grid step (~85% HBM roofline per docs)
_VMEM_LIMIT = 32 * 1024 * 1024      # safe on v5e/v6e/v7x; actual use is a few MiB


def _round_up(v, m):
    return (v + m - 1) // m * m


def _cparams(n_grid=1):
    return pltpu.CompilerParams(
        dimension_semantics=("parallel",) * n_grid,
        vmem_limit_bytes=_VMEM_LIMIT,
    )


def _tile_m(m):
    return m if m <= _TILE_M else _TILE_M


# ---------------------------------------------------------------- Pallas kernels
def _mm_act_kernel(act, x_ref, w_ref, o_ref):
    """o = act(x @ w); bf16 operands, f32 MXU accumulation, activation on VPU/EUP."""
    acc = jnp.dot(x_ref[...], w_ref[...], preferred_element_type=jnp.float32)
    if act == "leaky":
        acc = jnp.where(acc >= 0, acc, NEG_SLOPE * acc)
    elif act == "sigmoid":
        e = jnp.exp(-jnp.abs(acc))  # numerically stable sigmoid
        acc = jnp.where(acc >= 0, 1.0 / (1.0 + e), e / (1.0 + e))
    o_ref[...] = acc.astype(o_ref.dtype)


def _mm_bn_lrelu_fused_kernel(m_total, x_ref, w_ref, g_ref, b_ref, o_ref):
    """Single-tile fully fused conv-matmul + BatchNorm(batch stats) + LeakyReLU."""
    acc = jnp.dot(x_ref[...], w_ref[...], preferred_element_type=jnp.float32)
    inv_m = jnp.float32(1.0 / m_total)
    mean = jnp.sum(acc, axis=0, keepdims=True) * inv_m
    var = jnp.maximum(jnp.sum(acc * acc, axis=0, keepdims=True) * inv_m - mean * mean, 0.0)
    scale = g_ref[...] * jax.lax.rsqrt(var + BN_EPS)
    shift = b_ref[...] - mean * scale
    z = acc * scale + shift
    o_ref[...] = jnp.where(z >= 0, z, NEG_SLOPE * z).astype(o_ref.dtype)


def _mm_stats_kernel(m_total, tile_m, x_ref, w_ref, y_ref, stats_ref):
    """y = x @ w (stored bf16) with fused per-tile per-channel sum / sum-of-squares."""
    acc = jnp.dot(x_ref[...], w_ref[...], preferred_element_type=jnp.float32)
    y_ref[...] = acc.astype(y_ref.dtype)
    if m_total % tile_m != 0:  # mask garbage rows of a partial last tile
        row = pl.program_id(0) * tile_m + jax.lax.broadcasted_iota(
            jnp.int32, acc.shape, 0)
        acc = jnp.where(row < m_total, acc, 0.0)
    s = jnp.sum(acc, axis=0, keepdims=True)
    ss = jnp.sum(acc * acc, axis=0, keepdims=True)
    stats_ref[...] = jnp.concatenate([s, ss], axis=0)[None]


def _bn_apply_kernel(y_ref, scale_ref, shift_ref, o_ref):
    """Per-channel affine (folded BatchNorm) + LeakyReLU(0.2); compute in f32."""
    z = y_ref[...].astype(jnp.float32) * scale_ref[...] + shift_ref[...]
    o_ref[...] = jnp.where(z >= 0, z, NEG_SLOPE * z).astype(o_ref.dtype)


# ---------------------------------------------------------------- kernel wrappers
def _mm_act(patches, w_mat, act, out_dtype):
    M, K = patches.shape
    Cp = w_mat.shape[1]
    tm = _tile_m(M)
    return pl.pallas_call(
        functools.partial(_mm_act_kernel, act),
        out_shape=jax.ShapeDtypeStruct((M, Cp), out_dtype),
        grid=(pl.cdiv(M, tm),),
        in_specs=[
            pl.BlockSpec((tm, K), lambda i: (i, 0)),
            pl.BlockSpec((K, Cp), lambda i: (0, 0)),
        ],
        out_specs=pl.BlockSpec((tm, Cp), lambda i: (i, 0)),
        compiler_params=_cparams(),
    )(patches, w_mat)


def _mm_bn_lrelu_fused(patches, w_mat, gamma_p, beta_p):
    """Single-tile fused path: everything in one kernel, no HBM intermediate."""
    M, K = patches.shape
    Cp = w_mat.shape[1]
    return pl.pallas_call(
        functools.partial(_mm_bn_lrelu_fused_kernel, M),
        out_shape=jax.ShapeDtypeStruct((M, Cp), jnp.bfloat16),
        grid=(1,),
        in_specs=[
            pl.BlockSpec((M, K), lambda i: (0, 0)),
            pl.BlockSpec((K, Cp), lambda i: (0, 0)),
            pl.BlockSpec((1, Cp), lambda i: (0, 0)),
            pl.BlockSpec((1, Cp), lambda i: (0, 0)),
        ],
        out_specs=pl.BlockSpec((M, Cp), lambda i: (0, 0)),
        compiler_params=_cparams(),
    )(patches, w_mat, gamma_p.reshape(1, Cp), beta_p.reshape(1, Cp))


def _mm_with_stats(patches, w_mat):
    M, K = patches.shape
    Cp = w_mat.shape[1]
    tm = _tile_m(M)
    nt = pl.cdiv(M, tm)
    return pl.pallas_call(
        functools.partial(_mm_stats_kernel, M, tm),
        out_shape=(
            jax.ShapeDtypeStruct((M, Cp), jnp.bfloat16),   # bf16 intermediate (halves HBM traffic)
            jax.ShapeDtypeStruct((nt, 2, Cp), jnp.float32),
        ),
        grid=(nt,),
        in_specs=[
            pl.BlockSpec((tm, K), lambda i: (i, 0)),
            pl.BlockSpec((K, Cp), lambda i: (0, 0)),
        ],
        out_specs=(
            pl.BlockSpec((tm, Cp), lambda i: (i, 0)),
            pl.BlockSpec((1, 2, Cp), lambda i: (i, 0, 0)),
        ),
        compiler_params=_cparams(),
    )(patches, w_mat)


def _bn_apply(y, scale, shift, out_dtype):
    M, Cp = y.shape
    tm = _tile_m(M)
    return pl.pallas_call(
        _bn_apply_kernel,
        out_shape=jax.ShapeDtypeStruct((M, Cp), out_dtype),
        grid=(pl.cdiv(M, tm),),
        in_specs=[
            pl.BlockSpec((tm, Cp), lambda i: (i, 0)),
            pl.BlockSpec((1, Cp), lambda i: (0, 0)),
            pl.BlockSpec((1, Cp), lambda i: (0, 0)),
        ],
        out_specs=pl.BlockSpec((tm, Cp), lambda i: (i, 0)),
        compiler_params=_cparams(),
    )(y, scale, shift)


def _conv_bn_lrelu(patches, w_mat, gamma_p, beta_p):
    """conv-matmul + BatchNorm(batch stats) + LeakyReLU(0.2).

    Fast path: one fully fused kernel when the whole M fits in a single tile.
    General path: matmul+stats epilogue (bf16 y) -> tiny XLA scale/shift ->
    fused affine+LReLU apply kernel.
    """
    M = patches.shape[0]
    Cp = w_mat.shape[1]
    if M <= _TILE_M:
        return _mm_bn_lrelu_fused(patches, w_mat, gamma_p, beta_p)

    y, stats = _mm_with_stats(patches, w_mat)
    s = jnp.sum(stats[:, 0, :], axis=0)
    ss = jnp.sum(stats[:, 1, :], axis=0)
    mean = s * (1.0 / M)
    var = jnp.maximum(ss * (1.0 / M) - mean * mean, 0.0)  # biased var = PyTorch train mode
    scale = gamma_p * jax.lax.rsqrt(var + BN_EPS)
    shift = beta_p - mean * scale
    return _bn_apply(y, scale.reshape(1, Cp), shift.reshape(1, Cp), jnp.bfloat16)


# ---------------------------------------------------------------- plain-JAX glue
def _im2col(x_nhwc, k, stride, pad):
    """[N,H,W,C] -> patch matrix [N*OH*OW, k*k*C], rows (n,oh,ow), cols (kh,kw,cin)."""
    N, H, W, C = x_nhwc.shape
    xp = jnp.pad(x_nhwc, ((0, 0), (pad, pad), (pad, pad), (0, 0)))
    OH = (H + 2 * pad - k) // stride + 1
    OW = (W + 2 * pad - k) // stride + 1
    cols = []
    for kh in range(k):
        for kw in range(k):
            cols.append(xp[:, kh:kh + stride * OH:stride, kw:kw + stride * OW:stride, :])
    p = jnp.stack(cols, axis=3)  # [N, OH, OW, k*k, C]
    return p.reshape(N * OH * OW, k * k * C), N, OH, OW


def _prep_conv_weight(w):
    """PyTorch [Cout,Cin,KH,KW] -> bf16 [KH*KW*Cin, round_up(Cout,128)] (zero-padded)."""
    Cout, Cin, KH, KW = w.shape
    wm = jnp.transpose(w, (2, 3, 1, 0)).reshape(KH * KW * Cin, Cout)
    wm = jnp.pad(wm, ((0, 0), (0, _round_up(Cout, _LANE) - Cout)))
    return wm.astype(jnp.bfloat16)


def _prep_bn_param(p):
    c = p.shape[0]
    return jnp.pad(p.astype(jnp.float32), (0, _round_up(c, _LANE) - c))


def init_raw_params(nc, ndf, key):
    """PyTorch-layout DCGAN params (conv N(0, 0.02), BN gamma=1 / beta=0)."""
    ks = jax.random.split(key, 4)
    std = jnp.float32(0.02)
    return dict(
        w1=std * jax.random.normal(ks[0], (ndf, nc, 4, 4), jnp.float32),
        w2=std * jax.random.normal(ks[1], (ndf * 2, ndf, 4, 4), jnp.float32),
        w3=std * jax.random.normal(ks[2], (ndf * 4, ndf * 2, 4, 4), jnp.float32),
        w4=std * jax.random.normal(ks[3], (1, ndf * 4, 4, 4), jnp.float32),
        g2=jnp.ones((ndf * 2,), jnp.float32), b2=jnp.zeros((ndf * 2,), jnp.float32),
        g3=jnp.ones((ndf * 4,), jnp.float32), b3=jnp.zeros((ndf * 4,), jnp.float32),
    )


def prepare_params(raw):
    """One-time reformat (hoisted out of forward): bf16 lane-padded matmul weights."""
    return dict(
        w1m=_prep_conv_weight(raw["w1"]), w2m=_prep_conv_weight(raw["w2"]),
        w3m=_prep_conv_weight(raw["w3"]), w4m=_prep_conv_weight(raw["w4"]),
        g2=_prep_bn_param(raw["g2"]), b2=_prep_bn_param(raw["b2"]),
        g3=_prep_bn_param(raw["g3"]), b3=_prep_bn_param(raw["b3"]),
    )


def make_discriminator_forward(nc, ndf):
    c1, c2, c3 = ndf, ndf * 2, ndf * 4

    def forward(params, x_nchw):
        x = jnp.transpose(x_nchw, (0, 2, 3, 1)).astype(jnp.bfloat16)  # NCHW -> NHWC bf16

        # Conv(nc -> ndf, 4, 2, 1, bias=False) + LeakyReLU(0.2)
        p, N, OH, OW = _im2col(x, 4, 2, 1)
        x = _mm_act(p, params["w1m"], "leaky", jnp.bfloat16)
        x = x.reshape(N, OH, OW, -1)[..., :c1]

        # Conv(ndf -> 2*ndf, 4, 2, 1) + BatchNorm2d (batch stats) + LeakyReLU(0.2)
        p, N, OH, OW = _im2col(x, 4, 2, 1)
        x = _conv_bn_lrelu(p, params["w2m"], params["g2"], params["b2"])
        x = x.reshape(N, OH, OW, -1)[..., :c2]

        # Conv(2*ndf -> 4*ndf, 4, 2, 1) + BatchNorm2d + LeakyReLU(0.2)
        p, N, OH, OW = _im2col(x, 4, 2, 1)
        x = _conv_bn_lrelu(p, params["w3m"], params["g3"], params["b3"])
        x = x.reshape(N, OH, OW, -1)[..., :c3]

        # Conv(4*ndf -> 1, 4, 1, 0) + Sigmoid
        p, N, OH, OW = _im2col(x, 4, 1, 0)
        y = _mm_act(p, params["w4m"], "sigmoid", jnp.float32)  # [N*OH*OW, 128]

        # PyTorch: output.view(-1, 1).squeeze(1); rows are already ordered (n, oh, ow)
        return y[:, 0]

    return forward


# ---------------------------------------------------------------- pure-JAX reference
def reference_forward(raw, x_nchw):
    def conv(v, w, stride, pad):
        return jax.lax.conv_general_dilated(
            v, w, (stride, stride), [(pad, pad), (pad, pad)],
            dimension_numbers=("NCHW", "OIHW", "NCHW"))

    def lrelu(v):
        return jnp.where(v >= 0, v, NEG_SLOPE * v)

    def bn(v, g, b):
        mean = jnp.mean(v, axis=(0, 2, 3), keepdims=True)
        var = jnp.mean((v - mean) ** 2, axis=(0, 2, 3), keepdims=True)
        return (v - mean) * jax.lax.rsqrt(var + BN_EPS) * g.reshape(1, -1, 1, 1) \
            + b.reshape(1, -1, 1, 1)

    h = lrelu(conv(x_nchw, raw["w1"], 2, 1))
    h = lrelu(bn(conv(h, raw["w2"], 2, 1), raw["g2"], raw["b2"]))
    h = lrelu(bn(conv(h, raw["w3"], 2, 1), raw["g3"], raw["b3"]))
    h = jax.nn.sigmoid(conv(h, raw["w4"], 1, 0))
    return h.reshape(-1)


if __name__ == "__main__":
    nc, ndf = 3, 8
    key = jax.random.PRNGKey(0)
    kx, kp = jax.random.split(key)
    # 32x32 input so the final 4x4 valid conv yields exactly one logit per sample.
    x = jax.random.normal(kx, (2, nc, 32, 32), jnp.float32)  # NCHW, like PyTorch

    raw = init_raw_params(nc, ndf, kp)
    params = prepare_params(raw)  # weight reformat / padding / bf16 cast hoisted to init

    fwd = jax.jit(make_discriminator_forward(nc, ndf))
    out = fwd(params, x)
    jax.block_until_ready(out)

    assert out.shape == (2,)
    assert bool(jnp.all(jnp.isfinite(out))) and bool(jnp.all((out >= 0) & (out <= 1)))

    ref = reference_forward(raw, x)
    max_err = float(jnp.max(jnp.abs(out - ref)))
    assert max_err < 5e-2, (max_err, out, ref)  # loose tol: bf16 operands, f32 accumulation
    print("KERNEL_OK")
</pallas_src>

<mosaic_0001>
module attributes {stable_mosaic.version = 11 : i64} {
  func.func @_mm_act_kernel(%arg0: i32, %arg1: memref<512x48xbf16, #tpu.memory_space<vmem>>, %arg2: memref<48x128xbf16, #tpu.memory_space<vmem>>, %arg3: memref<512x128xbf16, #tpu.memory_space<vmem>>) attributes {dimension_semantics = [#tpu.dimension_semantics<parallel>], iteration_bounds = array<i64: 1>, scalar_prefetch = 0 : i64, scratch_operands = 0 : i64, tpu.core_type = #tpu.core_type<tc>, window_params = [{transform_indices = @transform_0, window_bounds = array<i64: 512, 48>}, {pipeline_mode = #tpu.pipeline_mode<synchronous>, transform_indices = @transform_1, window_bounds = array<i64: 48, 128>}, {transform_indices = @transform_2, window_bounds = array<i64: 512, 128>}]} {
    %c0 = arith.constant 0 : index
    %c0_0 = arith.constant 0 : index
    %0 = vector.load %arg1[%c0, %c0_0] : memref<512x48xbf16, #tpu.memory_space<vmem>>, vector<512x48xbf16>
    %c0_1 = arith.constant 0 : index
    %c0_2 = arith.constant 0 : index
    %1 = vector.load %arg2[%c0_1, %c0_2] : memref<48x128xbf16, #tpu.memory_space<vmem>>, vector<48x128xbf16>
    %cst = arith.constant dense<0.000000e+00> : vector<512x128xf32>
    %2 = tpu.matmul %0, %1, %cst {dimension_numbers = #tpu.dot_dimension_numbers<[1], [0], [0], [1], [0, 0, 1, 1], [], []>} : vector<512x48xbf16>, vector<48x128xbf16>, vector<512x128xf32> -> vector<512x128xf32>
    %cst_3 = arith.constant 0.000000e+00 : f32
    %3 = vector.broadcast %cst_3 : f32 to vector<512x128xf32>
    %4 = arith.cmpf oge, %2, %3 : vector<512x128xf32>
    %cst_4 = arith.constant 2.000000e-01 : f32
    %5 = vector.broadcast %cst_4 : f32 to vector<512x128xf32>
    %6 = arith.mulf %5, %2 : vector<512x128xf32>
    %7 = arith.select %4, %2, %6 : vector<512x128xi1>, vector<512x128xf32>
    %8 = arith.truncf %7 : vector<512x128xf32> to vector<512x128xbf16>
    %c0_5 = arith.constant 0 : index
    %c0_6 = arith.constant 0 : index
    %9 = vector.load %arg3[%c0_5, %c0_6] : memref<512x128xbf16, #tpu.memory_space<vmem>>, vector<512x128xbf16>
    tpu.vector_store %arg3[%c0_5, %c0_6], %8 {strides = array<i32>} : memref<512x128xbf16, #tpu.memory_space<vmem>>, vector<512x128xbf16>,
    return
  }
  func.func @transform_0(%arg0: i32) -> (i32, i32) {
    %c0_i32 = arith.constant 0 : i32
    %c0_i32_0 = arith.constant 0 : i32
    return %arg0, %c0_i32 : i32, i32
  }
  func.func @transform_1(%arg0: i32) -> (i32, i32) {
    %c0_i32 = arith.constant 0 : i32
    %c0_i32_0 = arith.constant 0 : i32
    %c0_i32_1 = arith.constant 0 : i32
    return %c0_i32, %c0_i32_0 : i32, i32
  }
  func.func @transform_2(%arg0: i32) -> (i32, i32) {
    %c0_i32 = arith.constant 0 : i32
    %c0_i32_0 = arith.constant 0 : i32
    return %arg0, %c0_i32 : i32, i32
  }
}

module attributes {stable_mosaic.version = 11 : i64} {
  func.func @_mm_bn_lrelu_fused_kernel(%arg0: i32, %arg1: memref<128x128xbf16, #tpu.memory_space<vmem>>, %arg2: memref<128x128xbf16, #tpu.memory_space<vmem>>, %arg3: memref<1x128xf32, #tpu.memory_space<vmem>>, %arg4: memref<1x128xf32, #tpu.memory_space<vmem>>, %arg5: memref<128x128xbf16, #tpu.memory_space<vmem>>) attributes {dimension_semantics = [#tpu.dimension_semantics<parallel>], iteration_bounds = array<i64: 1>, scalar_prefetch = 0 : i64, scratch_operands = 0 : i64, tpu.core_type = #tpu.core_type<tc>, window_params = [{pipeline_mode = #tpu.pipeline_mode<synchronous>, transform_indices = @transform_0, window_bounds = array<i64: 128, 128>}, {pipeline_mode = #tpu.pipeline_mode<synchronous>, transform_indices = @transform_1, window_bounds = array<i64: 128, 128>}, {pipeline_mode = #tpu.pipeline_mode<synchronous>, transform_indices = @transform_2, window_bounds = array<i64: 1, 128>}, {pipeline_mode = #tpu.pipeline_mode<synchronous>, transform_indices = @transform_3, window_bounds = array<i64: 1, 128>}, {pipeline_mode = #tpu.pipeline_mode<synchronous>, transform_indices = @transform_4, window_bounds = array<i64: 128, 128>}]} {
    %c0 = arith.constant 0 : index
    %c0_0 = arith.constant 0 : index
    %0 = vector.load %arg1[%c0, %c0_0] : memref<128x128xbf16, #tpu.memory_space<vmem>>, vector<128x128xbf16>
    %c0_1 = arith.constant 0 : index
    %c0_2 = arith.constant 0 : index
    %1 = vector.load %arg2[%c0_1, %c0_2] : memref<128x128xbf16, #tpu.memory_space<vmem>>, vector<128x128xbf16>
    %cst = arith.constant dense<0.000000e+00> : vector<128x128xf32>
    %2 = tpu.matmul %0, %1, %cst {dimension_numbers = #tpu.dot_dimension_numbers<[1], [0], [0], [1], [0, 0, 1, 1], [], []>} : vector<128x128xbf16>, vector<128x128xbf16>, vector<128x128xf32> -> vector<128x128xf32>
    %cst_3 = arith.constant dense<0.000000e+00> : vector<128xf32>
    %3 = vector.multi_reduction <add>, %2, %cst_3 [0] : vector<128x128xf32> to vector<128xf32>
    %4 = vector.shape_cast %3 : vector<128xf32> to vector<1x128xf32>
    %cst_4 = arith.constant 7.812500e-03 : f32
    %5 = vector.broadcast %cst_4 : f32 to vector<1x128xf32>
    %6 = arith.mulf %4, %5 : vector<1x128xf32>
    %7 = arith.mulf %2, %2 : vector<128x128xf32>
    %cst_5 = arith.constant dense<0.000000e+00> : vector<128xf32>
    %8 = vector.multi_reduction <add>, %7, %cst_5 [0] : vector<128x128xf32> to vector<128xf32>
    %9 = vector.shape_cast %8 : vector<128xf32> to vector<1x128xf32>
    %cst_6 = arith.constant 7.812500e-03 : f32
    %10 = vector.broadcast %cst_6 : f32 to vector<1x128xf32>
    %11 = arith.mulf %9, %10 : vector<1x128xf32>
    %12 = arith.mulf %6, %6 : vector<1x128xf32>
    %13 = arith.subf %11, %12 : vector<1x128xf32>
    %cst_7 = arith.constant 0.000000e+00 : f32
    %14 = vector.broadcast %cst_7 : f32 to vector<1x128xf32>
    %15 = arith.maximumf %13, %14 : vector<1x128xf32>
    %c0_8 = arith.constant 0 : index
    %c0_9 = arith.constant 0 : index
    %16 = vector.load %arg3[%c0_8, %c0_9] : memref<1x128xf32, #tpu.memory_space<vmem>>, vector<1x128xf32>
    %cst_10 = arith.constant 9.99999974E-6 : f32
    %17 = vector.broadcast %cst_10 : f32 to vector<1x128xf32>
    %18 = arith.addf %15, %17 : vector<1x128xf32>
    %19 = math.rsqrt %18 : vector<1x128xf32>
    %20 = arith.mulf %16, %19 : vector<1x128xf32>
    %c0_11 = arith.constant 0 : index
    %c0_12 = arith.constant 0 : index
    %21 = vector.load %arg4[%c0_11, %c0_12] : memref<1x128xf32, #tpu.memory_space<vmem>>, vector<1x128xf32>
    %22 = arith.mulf %6, %20 : vector<1x128xf32>
    %23 = arith.subf %21, %22 : vector<1x128xf32>
    %24 = vector.broadcast %20 : vector<1x128xf32> to vector<128x128xf32>
    %25 = arith.mulf %2, %24 : vector<128x128xf32>
    %26 = vector.broadcast %23 : vector<1x128xf32> to vector<128x128xf32>
    %27 = arith.addf %25, %26 : vector<128x128xf32>
    %cst_13 = arith.constant 0.000000e+00 : f32
    %28 = vector.broadcast %cst_13 : f32 to vector<128x128xf32>
    %29 = arith.cmpf oge, %27, %28 : vector<128x128xf32>
    %cst_14 = arith.constant 2.000000e-01 : f32
    %30 = vector.broadcast %cst_14 : f32 to vector<128x128xf32>
    %31 = arith.mulf %30, %27 : vector<128x128xf32>
    %32 = arith.select %29, %27, %31 : vector<128x128xi1>, vector<128x128xf32>
    %33 = arith.truncf %32 : vector<128x128xf32> to vector<128x128xbf16>
    %c0_15 = arith.constant 0 : index
    %c0_16 = arith.constant 0 : index
    %34 = vector.load %arg5[%c0_15, %c0_16] : memref<128x128xbf16, #tpu.memory_space<vmem>>, vector<128x128xbf16>
    tpu.vector_store %arg5[%c0_15, %c0_16], %33 {strides = array<i32>} : memref<128x128xbf16, #tpu.memory_space<vmem>>, vector<128x128xbf16>,
    return
  }
  func.func @transform_0(%arg0: i32) -> (i32, i32) {
    %c0_i32 = arith.constant 0 : i32
    %c0_i32_0 = arith.constant 0 : i32
    %c0_i32_1 = arith.constant 0 : i32
    return %c0_i32, %c0_i32_0 : i32, i32
  }
  func.func @transform_1(%arg0: i32) -> (i32, i32) {
    %c0_i32 = arith.constant 0 : i32
    %c0_i32_0 = arith.constant 0 : i32
    %c0_i32_1 = arith.constant 0 : i32
    return %c0_i32, %c0_i32_0 : i32, i32
  }
  func.func @transform_2(%arg0: i32) -> (i32, i32) {
    %c0_i32 = arith.constant 0 : i32
    %c0_i32_0 = arith.constant 0 : i32
    %c0_i32_1 = arith.constant 0 : i32
    return %c0_i32, %c0_i32_0 : i32, i32
  }
  func.func @transform_3(%arg0: i32) -> (i32, i32) {
    %c0_i32 = arith.constant 0 : i32
    %c0_i32_0 = arith.constant 0 : i32
    %c0_i32_1 = arith.constant 0 : i32
    return %c0_i32, %c0_i32_0 : i32, i32
  }
  func.func @transform_4(%arg0: i32) -> (i32, i32) {
    %c0_i32 = arith.constant 0 : i32
    %c0_i32_0 = arith.constant 0 : i32
    %c0_i32_1 = arith.constant 0 : i32
    return %c0_i32, %c0_i32_0 : i32, i32
  }
}

module attributes {stable_mosaic.version = 11 : i64} {
  func.func @_mm_bn_lrelu_fused_kernel(%arg0: i32, %arg1: memref<32x256xbf16, #tpu.memory_space<vmem>>, %arg2: memref<256x128xbf16, #tpu.memory_space<vmem>>, %arg3: memref<1x128xf32, #tpu.memory_space<vmem>>, %arg4: memref<1x128xf32, #tpu.memory_space<vmem>>, %arg5: memref<32x128xbf16, #tpu.memory_space<vmem>>) attributes {dimension_semantics = [#tpu.dimension_semantics<parallel>], iteration_bounds = array<i64: 1>, scalar_prefetch = 0 : i64, scratch_operands = 0 : i64, tpu.core_type = #tpu.core_type<tc>, window_params = [{pipeline_mode = #tpu.pipeline_mode<synchronous>, transform_indices = @transform_0, window_bounds = array<i64: 32, 256>}, {pipeline_mode = #tpu.pipeline_mode<synchronous>, transform_indices = @transform_1, window_bounds = array<i64: 256, 128>}, {pipeline_mode = #tpu.pipeline_mode<synchronous>, transform_indices = @transform_2, window_bounds = array<i64: 1, 128>}, {pipeline_mode = #tpu.pipeline_mode<synchronous>, transform_indices = @transform_3, window_bounds = array<i64: 1, 128>}, {pipeline_mode = #tpu.pipeline_mode<synchronous>, transform_indices = @transform_4, window_bounds = array<i64: 32, 128>}]} {
    %c0 = arith.constant 0 : index
    %c0_0 = arith.constant 0 : index
    %0 = vector.load %arg1[%c0, %c0_0] : memref<32x256xbf16, #tpu.memory_space<vmem>>, vector<32x256xbf16>
    %c0_1 = arith.constant 0 : index
    %c0_2 = arith.constant 0 : index
    %1 = vector.load %arg2[%c0_1, %c0_2] : memref<256x128xbf16, #tpu.memory_space<vmem>>, vector<256x128xbf16>
    %cst = arith.constant dense<0.000000e+00> : vector<32x128xf32>
    %2 = tpu.matmul %0, %1, %cst {dimension_numbers = #tpu.dot_dimension_numbers<[1], [0], [0], [1], [0, 0, 1, 1], [], []>} : vector<32x256xbf16>, vector<256x128xbf16>, vector<32x128xf32> -> vector<32x128xf32>
    %cst_3 = arith.constant dense<0.000000e+00> : vector<128xf32>
    %3 = vector.multi_reduction <add>, %2, %cst_3 [0] : vector<32x128xf32> to vector<128xf32>
    %4 = vector.shape_cast %3 : vector<128xf32> to vector<1x128xf32>
    %cst_4 = arith.constant 3.125000e-02 : f32
    %5 = vector.broadcast %cst_4 : f32 to vector<1x128xf32>
    %6 = arith.mulf %4, %5 : vector<1x128xf32>
    %7 = arith.mulf %2, %2 : vector<32x128xf32>
    %cst_5 = arith.constant dense<0.000000e+00> : vector<128xf32>
    %8 = vector.multi_reduction <add>, %7, %cst_5 [0] : vector<32x128xf32> to vector<128xf32>
    %9 = vector.shape_cast %8 : vector<128xf32> to vector<1x128xf32>
    %cst_6 = arith.constant 3.125000e-02 : f32
    %10 = vector.broadcast %cst_6 : f32 to vector<1x128xf32>
    %11 = arith.mulf %9, %10 : vector<1x128xf32>
    %12 = arith.mulf %6, %6 : vector<1x128xf32>
    %13 = arith.subf %11, %12 : vector<1x128xf32>
    %cst_7 = arith.constant 0.000000e+00 : f32
    %14 = vector.broadcast %cst_7 : f32 to vector<1x128xf32>
    %15 = arith.maximumf %13, %14 : vector<1x128xf32>
    %c0_8 = arith.constant 0 : index
    %c0_9 = arith.constant 0 : index
    %16 = vector.load %arg3[%c0_8, %c0_9] : memref<1x128xf32, #tpu.memory_space<vmem>>, vector<1x128xf32>
    %cst_10 = arith.constant 9.99999974E-6 : f32
    %17 = vector.broadcast %cst_10 : f32 to vector<1x128xf32>
    %18 = arith.addf %15, %17 : vector<1x128xf32>
    %19 = math.rsqrt %18 : vector<1x128xf32>
    %20 = arith.mulf %16, %19 : vector<1x128xf32>
    %c0_11 = arith.constant 0 : index
    %c0_12 = arith.constant 0 : index
    %21 = vector.load %arg4[%c0_11, %c0_12] : memref<1x128xf32, #tpu.memory_space<vmem>>, vector<1x128xf32>
    %22 = arith.mulf %6, %20 : vector<1x128xf32>
    %23 = arith.subf %21, %22 : vector<1x128xf32>
    %24 = vector.broadcast %20 : vector<1x128xf32> to vector<32x128xf32>
    %25 = arith.mulf %2, %24 : vector<32x128xf32>
    %26 = vector.broadcast %23 : vector<1x128xf32> to vector<32x128xf32>
    %27 = arith.addf %25, %26 : vector<32x128xf32>
    %cst_13 = arith.constant 0.000000e+00 : f32
    %28 = vector.broadcast %cst_13 : f32 to vector<32x128xf32>
    %29 = arith.cmpf oge, %27, %28 : vector<32x128xf32>
    %cst_14 = arith.constant 2.000000e-01 : f32
    %30 = vector.broadcast %cst_14 : f32 to vector<32x128xf32>
    %31 = arith.mulf %30, %27 : vector<32x128xf32>
    %32 = arith.select %29, %27, %31 : vector<32x128xi1>, vector<32x128xf32>
    %33 = arith.truncf %32 : vector<32x128xf32> to vector<32x128xbf16>
    %c0_15 = arith.constant 0 : index
    %c0_16 = arith.constant 0 : index
    %34 = vector.load %arg5[%c0_15, %c0_16] : memref<32x128xbf16, #tpu.memory_space<vmem>>, vector<32x128xbf16>
    tpu.vector_store %arg5[%c0_15, %c0_16], %33 {strides = array<i32>} : memref<32x128xbf16, #tpu.memory_space<vmem>>, vector<32x128xbf16>,
    return
  }
  func.func @transform_0(%arg0: i32) -> (i32, i32) {
    %c0_i32 = arith.constant 0 : i32
    %c0_i32_0 = arith.constant 0 : i32
    %c0_i32_1 = arith.constant 0 : i32
    return %c0_i32, %c0_i32_0 : i32, i32
  }
  func.func @transform_1(%arg0: i32) -> (i32, i32) {
    %c0_i32 = arith.constant 0 : i32
    %c0_i32_0 = arith.constant 0 : i32
    %c0_i32_1 = arith.constant 0 : i32
    return %c0_i32, %c0_i32_0 : i32, i32
  }
  func.func @transform_2(%arg0: i32) -> (i32, i32) {
    %c0_i32 = arith.constant 0 : i32
    %c0_i32_0 = arith.constant 0 : i32
    %c0_i32_1 = arith.constant 0 : i32
    return %c0_i32, %c0_i32_0 : i32, i32
  }
  func.func @transform_3(%arg0: i32) -> (i32, i32) {
    %c0_i32 = arith.constant 0 : i32
    %c0_i32_0 = arith.constant 0 : i32
    %c0_i32_1 = arith.constant 0 : i32
    return %c0_i32, %c0_i32_0 : i32, i32
  }
  func.func @transform_4(%arg0: i32) -> (i32, i32) {
    %c0_i32 = arith.constant 0 : i32
    %c0_i32_0 = arith.constant 0 : i32
    %c0_i32_1 = arith.constant 0 : i32
    return %c0_i32, %c0_i32_0 : i32, i32
  }
}

module attributes {stable_mosaic.version = 11 : i64} {
  func.func @_mm_act_kernel(%arg0: i32, %arg1: memref<2x512xbf16, #tpu.memory_space<vmem>>, %arg2: memref<512x128xbf16, #tpu.memory_space<vmem>>, %arg3: memref<2x128xf32, #tpu.memory_space<vmem>>) attributes {dimension_semantics = [#tpu.dimension_semantics<parallel>], iteration_bounds = array<i64: 1>, scalar_prefetch = 0 : i64, scratch_operands = 0 : i64, tpu.core_type = #tpu.core_type<tc>, window_params = [{transform_indices = @transform_0, window_bounds = array<i64: 2, 512>}, {pipeline_mode = #tpu.pipeline_mode<synchronous>, transform_indices = @transform_1, window_bounds = array<i64: 512, 128>}, {transform_indices = @transform_2, window_bounds = array<i64: 2, 128>}]} {
    %c0 = arith.constant 0 : index
    %c0_0 = arith.constant 0 : index
    %0 = vector.load %arg1[%c0, %c0_0] : memref<2x512xbf16, #tpu.memory_space<vmem>>, vector<2x512xbf16>
    %c0_1 = arith.constant 0 : index
    %c0_2 = arith.constant 0 : index
    %1 = vector.load %arg2[%c0_1, %c0_2] : memref<512x128xbf16, #tpu.memory_space<vmem>>, vector<512x128xbf16>
    %cst = arith.constant dense<0.000000e+00> : vector<2x128xf32>
    %2 = tpu.matmul %0, %1, %cst {dimension_numbers = #tpu.dot_dimension_numbers<[1], [0], [0], [1], [0, 0, 1, 1], [], []>} : vector<2x512xbf16>, vector<512x128xbf16>, vector<2x128xf32> -> vector<2x128xf32>
    %3 = math.absf %2 : vector<2x128xf32>
    %cst_3 = arith.constant 0.000000e+00 : f32
    %4 = vector.broadcast %cst_3 : f32 to vector<2x128xf32>
    %5 = arith.subf %4, %3 : vector<2x128xf32>
    %6 = math.exp %5 : vector<2x128xf32>
    %cst_4 = arith.constant 0.000000e+00 : f32
    %7 = vector.broadcast %cst_4 : f32 to vector<2x128xf32>
    %8 = arith.cmpf oge, %2, %7 : vector<2x128xf32>
    %cst_5 = arith.constant 1.000000e+00 : f32
    %9 = vector.broadcast %cst_5 : f32 to vector<2x128xf32>
    %10 = arith.addf %9, %6 : vector<2x128xf32>
    %cst_6 = arith.constant 1.000000e+00 : f32
    %11 = vector.broadcast %cst_6 : f32 to vector<2x128xf32>
    %12 = arith.divf %11, %10 : vector<2x128xf32>
    %cst_7 = arith.constant 1.000000e+00 : f32
    %13 = vector.broadcast %cst_7 : f32 to vector<2x128xf32>
    %14 = arith.addf %13, %6 : vector<2x128xf32>
    %15 = arith.divf %6, %14 : vector<2x128xf32>
    %16 = arith.select %8, %12, %15 : vector<2x128xi1>, vector<2x128xf32>
    %c0_8 = arith.constant 0 : index
    %c0_9 = arith.constant 0 : index
    %17 = vector.load %arg3[%c0_8, %c0_9] : memref<2x128xf32, #tpu.memory_space<vmem>>, vector<2x128xf32>
    tpu.vector_store %arg3[%c0_8, %c0_9], %16 {strides = array<i32>} : memref<2x128xf32, #tpu.memory_space<vmem>>, vector<2x128xf32>,
    return
  }
  func.func @transform_0(%arg0: i32) -> (i32, i32) {
    %c0_i32 = arith.constant 0 : i32
    %c0_i32_0 = arith.constant 0 : i32
    return %arg0, %c0_i32 : i32, i32
  }
  func.func @transform_1(%arg0: i32) -> (i32, i32) {
    %c0_i32 = arith.constant 0 : i32
    %c0_i32_0 = arith.constant 0 : i32
    %c0_i32_1 = arith.constant 0 : i32
    return %c0_i32, %c0_i32_0 : i32, i32
  }
  func.func @transform_2(%arg0: i32) -> (i32, i32) {
    %c0_i32 = arith.constant 0 : i32
    %c0_i32_0 = arith.constant 0 : i32
    return %arg0, %c0_i32 : i32, i32
  }
}

</mosaic_0001>

<llo_original>
// kernel: forward.4
$region0: #{forward.4}
  #allocation0 [shape = 'u32[]', space=smem, size = 0x4, offset = 0x4, fixed_abs, tag = 'smem constant byte address 0x4 - core index']
  #allocation1 [shape = 'u32[72,128]{1,0:T(1,128)}', space=vmem, size = 0x9000, scoped, tag = 'internal scratch']
  %s0 = inlined_call_operand.vmem [shape: bf16[512,48], index: 0, kind: input, shape index: {}]
  %s1 = inlined_call_operand.vmem [shape: bf16[48,128], index: 1, kind: input, shape index: {}]
  %s2 = inlined_call_operand.vmem [shape: bf16[512,128], index: 2, kind: output, shape index: {}]
  %s3 = sld [smem:[#allocation0]]
  $region18: #{forward.4} parent=0
    _
  %s5 = ssub.s32 1, %s3
  %s6 = scalar_select 0, %s5, %s3
  // Predicated region
  $region2: #{forward.4} parent=0 // pred_check
    _
  $region3: #{forward.4} parent=0 // pred_check_branch
    %8 = sbr.rel (0) target = $region5
  $region4: #{forward.4} parent=0 // pred_region
    _
  $region5: #{forward.4} parent=0 // pred_fallthru
    _
  // Predicated region
  $region6: #{forward.4} parent=0 // pred_check
    _
  $region7: #{forward.4} parent=0 // pred_check_branch
    %10 = sbr.rel (0) target = $region9
  $region8: #{forward.4} parent=0 // pred_region
    _
  $region9: #{forward.4} parent=0 // pred_fallthru
    _
  %v12 = vld [vmem:[%s0] sm:$0xf]
  %v13 = vld [vmem:[%s0 + $0x4] sm:$0xf]
  %v14 = vld [vmem:[%s0 + $0x8] sm:$0xf]
  %v15 = vld [vmem:[%s0 + $0xc] sm:$0xf]
  %v16 = vld [vmem:[%s0 + $0x10] sm:$0xf]
  %v17 = vld [vmem:[%s0 + $0x14] sm:$0xf]
  %v18 = vld [vmem:[%s0 + $0x18] sm:$0xf]
  %v19 = vld [vmem:[%s0 + $0x1c] sm:$0xf]
  %v20 = vld [vmem:[%s0 + $0x20] sm:$0xf]
  %v21 = vld [vmem:[%s0 + $0x24] sm:$0xf]
  %v22 = vld [vmem:[%s0 + $0x28] sm:$0xf]
  %v23 = vld [vmem:[%s0 + $0x2c] sm:$0xf]
  %v24 = vld [vmem:[%s0 + $0x30] sm:$0xf]
  %v25 = vld [vmem:[%s0 + $0x34] sm:$0xf]
  %v26 = vld [vmem:[%s0 + $0x38] sm:$0xf]
  %v27 = vld [vmem:[%s0 + $0x3c] sm:$0xf]
  %v28 = vld [vmem:[%s0 + $0x40] sm:$0xf]
  %v29 = vld [vmem:[%s0 + $0x44] sm:$0xf]
  %v30 = vld [vmem:[%s0 + $0x48] sm:$0xf]
  %v31 = vld [vmem:[%s0 + $0x4c] sm:$0xf]
  %v32 = vld [vmem:[%s0 + $0x50] sm:$0xf]
  %v33 = vld [vmem:[%s0 + $0x54] sm:$0xf]
  %v34 = vld [vmem:[%s0 + $0x58] sm:$0xf]
  %v35 = vld [vmem:[%s0 + $0x5c] sm:$0xf]
  %v36 = vld [vmem:[%s0 + $0x60] sm:$0xf]
  %v37 = vld [vmem:[%s0 + $0x64] sm:$0xf]
  %v38 = vld [vmem:[%s0 + $0x68] sm:$0xf]
  %v39 = vld [vmem:[%s0 + $0x6c] sm:$0xf]
  %v40 = vld [vmem:[%s0 + $0x70] sm:$0xf]
  %v41 = vld [vmem:[%s0 + $0x74] sm:$0xf]
  %v42 = vld [vmem:[%s0 + $0x78] sm:$0xf]
  %v43 = vld [vmem:[%s0 + $0x7c] sm:$0xf]
  %v44 = vld [vmem:[%s0 + $0x80] sm:$0xf]
  %v45 = vld [vmem:[%s0 + $0x84] sm:$0xf]
  %v46 = vld [vmem:[%s0 + $0x88] sm:$0xf]
  %v47 = vld [vmem:[%s0 + $0x8c] sm:$0xf]
  %v48 = vld [vmem:[%s0 + $0x90] sm:$0xf]
  %v49 = vld [vmem:[%s0 + $0x94] sm:$0xf]
  %v50 = vld [vmem:[%s0 + $0x98] sm:$0xf]
  %v51 = vld [vmem:[%s0 + $0x9c] sm:$0xf]
  %v52 = vld [vmem:[%s0 + $0xa0] sm:$0xf]
  %v53 = vld [vmem:[%s0 + $0xa4] sm:$0xf]
  %v54 = vld [vmem:[%s0 + $0xa8] sm:$0xf]
  %v55 = vld [vmem:[%s0 + $0xac] sm:$0xf]
  %v56 = vld [vmem:[%s0 + $0xb0] sm:$0xf]
  %v57 = vld [vmem:[%s0 + $0xb4] sm:$0xf]
  %v58 = vld [vmem:[%s0 + $0xb8] sm:$0xf]
  %v59 = vld [vmem:[%s0 + $0xbc] sm:$0xf]
  %v60 = vld [vmem:[%s0 + $0xc0] sm:$0xf]
  %v61 = vld [vmem:[%s0 + $0xc4] sm:$0xf]
  %v62 = vld [vmem:[%s0 + $0xc8] sm:$0xf]
  %v63 = vld [vmem:[%s0 + $0xcc] sm:$0xf]
  %v64 = vld [vmem:[%s0 + $0xd0] sm:$0xf]
  %v65 = vld [vmem:[%s0 + $0xd4] sm:$0xf]
  %v66 = vld [vmem:[%s0 + $0xd8] sm:$0xf]
  %v67 = vld [vmem:[%s0 + $0xdc] sm:$0xf]
  %v68 = vld [vmem:[%s0 + $0xe0] sm:$0xf]
  %v69 = vld [vmem:[%s0 + $0xe4] sm:$0xf]
  %v70 = vld [vmem:[%s0 + $0xe8] sm:$0xf]
  %v71 = vld [vmem:[%s0 + $0xec] sm:$0xf]
  %v72 = vld [vmem:[%s0 + $0xf0] sm:$0xf]
  %v73 = vld [vmem:[%s0 + $0xf4] sm:$0xf]
  %v74 = vld [vmem:[%s0 + $0xf8] sm:$0xf]
  %v75 = vld [vmem:[%s0 + $0xfc] sm:$0xf]
  %v76 = vld [vmem:[%s1] sm:$0xf]
  %v77 = vld [vmem:[%s1 + $0x4] sm:$0xf]
  %v78 = vld [vmem:[%s1 + $0x8] sm:$0xf]
  %v79 = vld [vmem:[%s1 + $0xc] sm:$0xf]
  %v80 = vld [vmem:[%s1 + $0x10] sm:$0xf]
  %v81 = vld [vmem:[%s1 + $0x14] sm:$0xf]
  %v146 = vunpack.c.l.b16 %v12
  %v147 = vunpack.c.l.b16 %v13
  %v148 = vunpack.c.l.b16 %v14
  %v149 = vunpack.c.l.b16 %v15
  %v150 = vunpack.c.l.b16 %v16
  %v151 = vunpack.c.l.b16 %v17
  %v152 = vunpack.c.l.b16 %v18
  %v153 = vunpack.c.l.b16 %v19
  %v154 = vunpack.c.l.b16 %v20
  %v155 = vunpack.c.l.b16 %v21
  %v156 = vunpack.c.l.b16 %v22
  %v157 = vunpack.c.l.b16 %v23
  %v158 = vunpack.c.l.b16 %v24
  %v159 = vunpack.c.l.b16 %v25
  %v160 = vunpack.c.l.b16 %v26
  %v161 = vunpack.c.l.b16 %v27
  %v162 = vunpack.c.l.b16 %v28
  %v163 = vunpack.c.l.b16 %v29
  %v164 = vunpack.c.l.b16 %v30
  %v165 = vunpack.c.l.b16 %v31
  %v166 = vunpack.c.l.b16 %v32
  %v167 = vunpack.c.l.b16 %v33
  %v168 = vunpack.c.l.b16 %v34
  %v169 = vunpack.c.l.b16 %v35
  %v170 = vunpack.c.l.b16 %v36
  %v171 = vunpack.c.l.b16 %v37
  %v172 = vunpack.c.l.b16 %v38
  %v173 = vunpack.c.l.b16 %v39
  %v174 = vunpack.c.l.b16 %v40
  %v175 = vunpack.c.l.b16 %v41
  %v176 = vunpack.c.l.b16 %v42
  %v177 = vunpack.c.l.b16 %v43
  %v178 = vunpack.c.l.b16 %v44
  %v179 = vunpack.c.l.b16 %v45
  %v180 = vunpack.c.l.b16 %v46
  %v181 = vunpack.c.l.b16 %v47
  %v182 = vunpack.c.l.b16 %v48
  %v183 = vunpack.c.l.b16 %v49
  %v184 = vunpack.c.l.b16 %v50
  %v185 = vunpack.c.l.b16 %v51
  %v186 = vunpack.c.l.b16 %v52
  %v187 = vunpack.c.l.b16 %v53
  %v188 = vunpack.c.l.b16 %v54
  %v189 = vunpack.c.l.b16 %v55
  %v190 = vunpack.c.l.b16 %v56
  %v191 = vunpack.c.l.b16 %v57
  %v192 = vunpack.c.l.b16 %v58
  %v193 = vunpack.c.l.b16 %v59
  %v194 = vunpack.c.l.b16 %v60
  %v195 = vunpack.c.l.b16 %v61
  %v196 = vunpack.c.l.b16 %v62
  %v197 = vunpack.c.l.b16 %v63
  %v198 = vunpack.c.l.b16 %v64
  %v199 = vunpack.c.l.b16 %v65
  %v200 = vunpack.c.l.b16 %v66
  %v201 = vunpack.c.l.b16 %v67
  %v202 = vunpack.c.l.b16 %v68
  %v203 = vunpack.c.l.b16 %v69
  %v204 = vunpack.c.l.b16 %v70
  %v205 = vunpack.c.l.b16 %v71
  %v206 = vunpack.c.l.b16 %v72
  %v207 = vunpack.c.l.b16 %v73
  %v208 = vunpack.c.l.b16 %v74
  %v209 = vunpack.c.l.b16 %v75
  %v210 = vpack.c.b16 %v147, %v146
  %v211 = vpack.c.b16 %v149, %v148
  %v212 = vpack.c.b16 %v151, %v150
  %v213 = vpack.c.b16 %v153, %v152
  %v214 = vpack.c.b16 %v155, %v154
  %v215 = vpack.c.b16 %v157, %v156
  %v216 = vpack.c.b16 %v159, %v158
  %v217 = vpack.c.b16 %v161, %v160
  %v218 = vpack.c.b16 %v163, %v162
  %v219 = vpack.c.b16 %v165, %v164
  %v220 = vpack.c.b16 %v167, %v166
  %v221 = vpack.c.b16 %v169, %v168
  %v222 = vpack.c.b16 %v171, %v170
  %v223 = vpack.c.b16 %v173, %v172
  %v224 = vpack.c.b16 %v175, %v174
  %v225 = vpack.c.b16 %v177, %v176
  %v226 = vpack.c.b16 %v179, %v178
  %v227 = vpack.c.b16 %v181, %v180
  %v228 = vpack.c.b16 %v183, %v182
  %v229 = vpack.c.b16 %v185, %v184
  %v230 = vpack.c.b16 %v187, %v186
  %v231 = vpack.c.b16 %v189, %v188
  %v232 = vpack.c.b16 %v191, %v190
  %v233 = vpack.c.b16 %v193, %v192
  %v234 = vpack.c.b16 %v195, %v194
  %v235 = vpack.c.b16 %v197, %v196
  %v236 = vpack.c.b16 %v199, %v198
  %v237 = vpack.c.b16 %v201, %v200
  %v238 = vpack.c.b16 %v203, %v202
  %v239 = vpack.c.b16 %v205, %v204
  %v240 = vpack.c.b16 %v207, %v206
  %v241 = vpack.c.b16 %v209, %v208
  %v248 = vunpack.c.l.b16 %v76
  %v249 = vunpack.c.l.b16 %v77
  %v250 = vunpack.c.l.b16 %v78
  %v251 = vunpack.c.l.b16 %v79
  %v252 = vunpack.c.l.b16 %v80
  %v253 = vunpack.c.l.b16 %v81
  %v254 = vpack.c.b16 %v249, %v248
  %v255 = vpack.c.b16 %v251, %v250
  %v256 = vpack.c.b16 %v253, %v252
  %vm260 = vcmask 392192
  %v262 = vsel %vm260, %v210, 0
  %v265 = vsel %vm260, %v211, 0
  %v268 = vsel %vm260, %v212, 0
  %v271 = vsel %vm260, %v213, 0
  %v274 = vsel %vm260, %v214, 0
  %v277 = vsel %vm260, %v215, 0
  %v280 = vsel %vm260, %v216, 0
  %v283 = vsel %vm260, %v217, 0
  %v286 = vsel %vm260, %v218, 0
  %v289 = vsel %vm260, %v219, 0
  %v292 = vsel %vm260, %v220, 0
  %v295 = vsel %vm260, %v221, 0
  %v298 = vsel %vm260, %v222, 0
  %v301 = vsel %vm260, %v223, 0
  %v304 = vsel %vm260, %v224, 0
  %v307 = vsel %vm260, %v225, 0
  %v310 = vsel %vm260, %v226, 0
  %v313 = vsel %vm260, %v227, 0
  %v316 = vsel %vm260, %v228, 0
  %v319 = vsel %vm260, %v229, 0
  %v322 = vsel %vm260, %v230, 0
  %v325 = vsel %vm260, %v231, 0
  %v328 = vsel %vm260, %v232, 0
  %v331 = vsel %vm260, %v233, 0
  %v334 = vsel %vm260, %v234, 0
  %v337 = vsel %vm260, %v235, 0
  %v340 = vsel %vm260, %v236, 0
  %v343 = vsel %vm260, %v237, 0
  %v346 = vsel %vm260, %v238, 0
  %v349 = vsel %vm260, %v239, 0
  %v352 = vsel %vm260, %v240, 0
  %v355 = vsel %vm260, %v241, 0
  %357 = vmatpush.bf16.msra.mxu0 0
  %358 = vmatpush.bf16.msra.mxu0 0
  %359 = vmatpush.bf16.msra.mxu0 0
  %360 = vmatpush.bf16.msra.mxu0 0
  %361 = vmatpush.bf16.msra.mxu0 0
  %362 = vmatpush.bf16.msra.mxu0 %v256
  %363 = vmatpush.bf16.msra.mxu0 %v255
  %364 = vmatpush.bf16.msra.mxu0 %v254
  %365 = vmatmul.bf16.gmra.mxu0 %v262
  %v366 = vpop.f32.mrf.mxu0
  %v367 = vadd.f32 0.0, %v366
  %v368 = vpop.f32.mrf.mxu0
  %v369 = vadd.f32 0.0, %v368
  %370 = vmatmul.bf16.gmra.mxu0 %v265
  %v371 = vpop.f32.mrf.mxu0
  %v372 = vadd.f32 0.0, %v371
  %v373 = vpop.f32.mrf.mxu0
  %v374 = vadd.f32 0.0, %v373
  %375 = vmatmul.bf16.gmra.mxu0 %v268
  %v376 = vpop.f32.mrf.mxu0
  %v377 = vadd.f32 0.0, %v376
  %v378 = vpop.f32.mrf.mxu0
  %v379 = vadd.f32 0.0, %v378
  %380 = vmatmul.bf16.gmra.mxu0 %v271
  %v381 = vpop.f32.mrf.mxu0
  %v382 = vadd.f32 0.0, %v381
  %v383 = vpop.f32.mrf.mxu0
  %v384 = vadd.f32 0.0, %v383
  %385 = vmatmul.bf16.gmra.mxu0 %v274
  %v386 = vpop.f32.mrf.mxu0
  %v387 = vadd.f32 0.0, %v386
  %v388 = vpop.f32.mrf.mxu0
  %v389 = vadd.f32 0.0, %v388
  %390 = vmatmul.bf16.gmra.mxu0 %v277
  %v391 = vpop.f32.mrf.mxu0
  %v392 = vadd.f32 0.0, %v391
  %v393 = vpop.f32.mrf.mxu0
  %v394 = vadd.f32 0.0, %v393
  %395 = vmatmul.bf16.gmra.mxu0 %v280
  %v396 = vpop.f32.mrf.mxu0
  %v397 = vadd.f32 0.0, %v396
  %v398 = vpop.f32.mrf.mxu0
  %v399 = vadd.f32 0.0, %v398
  %400 = vmatmul.bf16.gmra.mxu0 %v283
  %v401 = vpop.f32.mrf.mxu0
  %v402 = vadd.f32 0.0, %v401
  %v403 = vpop.f32.mrf.mxu0
  %v404 = vadd.f32 0.0, %v403
  %405 = vmatmul.bf16.gmra.mxu0 %v286
  %v406 = vpop.f32.mrf.mxu0
  %v407 = vadd.f32 0.0, %v406
  %v408 = vpop.f32.mrf.mxu0
  %v409 = vadd.f32 0.0, %v408
  %410 = vmatmul.bf16.gmra.mxu0 %v289
  %v411 = vpop.f32.mrf.mxu0
  %v412 = vadd.f32 0.0, %v411
  %v413 = vpop.f32.mrf.mxu0
  %v414 = vadd.f32 0.0, %v413
  %415 = vmatmul.bf16.gmra.mxu0 %v292
  %v416 = vpop.f32.mrf.mxu0
  %v417 = vadd.f32 0.0, %v416
  %v418 = vpop.f32.mrf.mxu0
  %v419 = vadd.f32 0.0, %v418
  %420 = vmatmul.bf16.gmra.mxu0 %v295
  %v421 = vpop.f32.mrf.mxu0
  %v422 = vadd.f32 0.0, %v421
  %v423 = vpop.f32.mrf.mxu0
  %v424 = vadd.f32 0.0, %v423
  %425 = vmatmul.bf16.gmra.mxu0 %v298
  %v426 = vpop.f32.mrf.mxu0
  %v427 = vadd.f32 0.0, %v426
  %v428 = vpop.f32.mrf.mxu0
  %v429 = vadd.f32 0.0, %v428
  %430 = vmatmul.bf16.gmra.mxu0 %v301
  %v431 = vpop.f32.mrf.mxu0
  %v432 = vadd.f32 0.0, %v431
  %v433 = vpop.f32.mrf.mxu0
  %v434 = vadd.f32 0.0, %v433
  %435 = vmatmul.bf16.gmra.mxu0 %v304
  %v436 = vpop.f32.mrf.mxu0
  %v437 = vadd.f32 0.0, %v436
  %v438 = vpop.f32.mrf.mxu0
  %v439 = vadd.f32 0.0, %v438
  %440 = vmatmul.bf16.gmra.mxu0 %v307
  %v441 = vpop.f32.mrf.mxu0
  %v442 = vadd.f32 0.0, %v441
  %v443 = vpop.f32.mrf.mxu0
  %v444 = vadd.f32 0.0, %v443
  %445 = vmatmul.bf16.gmra.mxu0 %v310
  %v446 = vpop.f32.mrf.mxu0
  %v447 = vadd.f32 0.0, %v446
  %v448 = vpop.f32.mrf.mxu0
  %v449 = vadd.f32 0.0, %v448
  %450 = vmatmul.bf16.gmra.mxu0 %v313
  %v451 = vpop.f32.mrf.mxu0
  %v452 = vadd.f32 0.0, %v451
  %v453 = vpop.f32.mrf.mxu0
  %v454 = vadd.f32 0.0, %v453
  %455 = vmatmul.bf16.gmra.mxu0 %v316
  %v456 = vpop.f32.mrf.mxu0
  %v457 = vadd.f32 0.0, %v456
  %v458 = vpop.f32.mrf.mxu0
  %v459 = vadd.f32 0.0, %v458
  %460 = vmatmul.bf16.gmra.mxu0 %v319
  %v461 = vpop.f32.mrf.mxu0
  %v462 = vadd.f32 0.0, %v461
  %v463 = vpop.f32.mrf.mxu0
  %v464 = vadd.f32 0.0, %v463
  %465 = vmatmul.bf16.gmra.mxu0 %v322
  %v466 = vpop.f32.mrf.mxu0
  %v467 = vadd.f32 0.0, %v466
  %v468 = vpop.f32.mrf.mxu0
  %v469 = vadd.f32 0.0, %v468
  %470 = vmatmul.bf16.gmra.mxu0 %v325
  %v471 = vpop.f32.mrf.mxu0
  %v472 = vadd.f32 0.0, %v471
  %v473 = vpop.f32.mrf.mxu0
  %v474 = vadd.f32 0.0, %v473
  %475 = vmatmul.bf16.gmra.mxu0 %v328
  %v476 = vpop.f32.mrf.mxu0
  %v477 = vadd.f32 0.0, %v476
  %v478 = vpop.f32.mrf.mxu0
  %v479 = vadd.f32 0.0, %v478
  %480 = vmatmul.bf16.gmra.mxu0 %v331
  %v481 = vpop.f32.mrf.mxu0
  %v482 = vadd.f32 0.0, %v481
  %v483 = vpop.f32.mrf.mxu0
  %v484 = vadd.f32 0.0, %v483
  %485 = vmatmul.bf16.gmra.mxu0 %v334
  %v486 = vpop.f32.mrf.mxu0
  %v487 = vadd.f32 0.0, %v486
  %v488 = vpop.f32.mrf.mxu0
  %v489 = vadd.f32 0.0, %v488
  %490 = vmatmul.bf16.gmra.mxu0 %v337
  %v491 = vpop.f32.mrf.mxu0
  %v492 = vadd.f32 0.0, %v491
  %v493 = vpop.f32.mrf.mxu0
  %v494 = vadd.f32 0.0, %v493
  %495 = vmatmul.bf16.gmra.mxu0 %v340
  %v496 = vpop.f32.mrf.mxu0
  %v497 = vadd.f32 0.0, %v496
  %v498 = vpop.f32.mrf.mxu0
  %v499 = vadd.f32 0.0, %v498
  %500 = vmatmul.bf16.gmra.mxu0 %v343
  %v501 = vpop.f32.mrf.mxu0
  %v502 = vadd.f32 0.0, %v501
  %v503 = vpop.f32.mrf.mxu0
  %v504 = vadd.f32 0.0, %v503
  %505 = vmatmul.bf16.gmra.mxu0 %v346
  %v506 = vpop.f32.mrf.mxu0
  %v507 = vadd.f32 0.0, %v506
  %v508 = vpop.f32.mrf.mxu0
  %v509 = vadd.f32 0.0, %v508
  %510 = vmatmul.bf16.gmra.mxu0 %v349
  %v511 = vpop.f32.mrf.mxu0
  %v512 = vadd.f32 0.0, %v511
  %v513 = vpop.f32.mrf.mxu0
  %v514 = vadd.f32 0.0, %v513
  %515 = vmatmul.bf16.gmra.mxu0 %v352
  %v516 = vpop.f32.mrf.mxu0
  %v517 = vadd.f32 0.0, %v516
  %v518 = vpop.f32.mrf.mxu0
  %v519 = vadd.f32 0.0, %v518
  %520 = vmatmul.bf16.gmra.mxu0 %v355
  %v521 = vpop.f32.mrf.mxu0
  %v522 = vadd.f32 0.0, %v521
  %v523 = vpop.f32.mrf.mxu0
  %v524 = vadd.f32 0.0, %v523
  %525 = vdwg.mxu0
  %vm526 = vcmp.ge.f32.partialorder %v367, 0.0
  %vm527 = vcmp.ge.f32.partialorder %v369, 0.0
  %vm528 = vcmp.ge.f32.partialorder %v372, 0.0
  %vm529 = vcmp.ge.f32.partialorder %v374, 0.0
  %vm530 = vcmp.ge.f32.partialorder %v377, 0.0
  %vm531 = vcmp.ge.f32.partialorder %v379, 0.0
  %vm532 = vcmp.ge.f32.partialorder %v382, 0.0
  %vm533 = vcmp.ge.f32.partialorder %v384, 0.0
  %vm534 = vcmp.ge.f32.partialorder %v387, 0.0
  %vm535 = vcmp.ge.f32.partialorder %v389, 0.0
  %vm536 = vcmp.ge.f32.partialorder %v392, 0.0
  %vm537 = vcmp.ge.f32.partialorder %v394, 0.0
  %vm538 = vcmp.ge.f32.partialorder %v397, 0.0
  %vm539 = vcmp.ge.f32.partialorder %v399, 0.0
  %vm540 = vcmp.ge.f32.partialorder %v402, 0.0
  %vm541 = vcmp.ge.f32.partialorder %v404, 0.0
  %vm542 = vcmp.ge.f32.partialorder %v407, 0.0
  %vm543 = vcmp.ge.f32.partialorder %v409, 0.0
  %vm544 = vcmp.ge.f32.partialorder %v412, 0.0
  %vm545 = vcmp.ge.f32.partialorder %v414, 0.0
  %vm546 = vcmp.ge.f32.partialorder %v417, 0.0
  %vm547 = vcmp.ge.f32.partialorder %v419, 0.0
  %vm548 = vcmp.ge.f32.partialorder %v422, 0.0
  %vm549 = vcmp.ge.f32.partialorder %v424, 0.0
  %vm550 = vcmp.ge.f32.partialorder %v427, 0.0
  %vm551 = vcmp.ge.f32.partialorder %v429, 0.0
  %vm552 = vcmp.ge.f32.partialorder %v432, 0.0
  %vm553 = vcmp.ge.f32.partialorder %v434, 0.0
  %vm554 = vcmp.ge.f32.partialorder %v437, 0.0
  %vm555 = vcmp.ge.f32.partialorder %v439, 0.0
  %vm556 = vcmp.ge.f32.partialorder %v442, 0.0
  %vm557 = vcmp.ge.f32.partialorder %v444, 0.0
  %vm558 = vcmp.ge.f32.partialorder %v447, 0.0
  %vm559 = vcmp.ge.f32.partialorder %v449, 0.0
  %vm560 = vcmp.ge.f32.partialorder %v452, 0.0
  %vm561 = vcmp.ge.f32.partialorder %v454, 0.0
  %vm562 = vcmp.ge.f32.partialorder %v457, 0.0
  %vm563 = vcmp.ge.f32.partialorder %v459, 0.0
  %vm564 = vcmp.ge.f32.partialorder %v462, 0.0
  %vm565 = vcmp.ge.f32.partialorder %v464, 0.0
  %vm566 = vcmp.ge.f32.partialorder %v467, 0.0
  %vm567 = vcmp.ge.f32.partialorder %v469, 0.0
  %vm568 = vcmp.ge.f32.partialorder %v472, 0.0
  %vm569 = vcmp.ge.f32.partialorder %v474, 0.0
  %vm570 = vcmp.ge.f32.partialorder %v477, 0.0
  %vm571 = vcmp.ge.f32.partialorder %v479, 0.0
  %vm572 = vcmp.ge.f32.partialorder %v482, 0.0
  %vm573 = vcmp.ge.f32.partialorder %v484, 0.0
  %vm574 = vcmp.ge.f32.partialorder %v487, 0.0
  %vm575 = vcmp.ge.f32.partialorder %v489, 0.0
  %vm576 = vcmp.ge.f32.partialorder %v492, 0.0
  %vm577 = vcmp.ge.f32.partialorder %v494, 0.0
  %vm578 = vcmp.ge.f32.partialorder %v497, 0.0
  %vm579 = vcmp.ge.f32.partialorder %v499, 0.0
  %vm580 = vcmp.ge.f32.partialorder %v502, 0.0
  %vm581 = vcmp.ge.f32.partialorder %v504, 0.0
  %vm582 = vcmp.ge.f32.partialorder %v507, 0.0
  %vm583 = vcmp.ge.f32.partialorder %v509, 0.0
  %vm584 = vcmp.ge.f32.partialorder %v512, 0.0
  %vm585 = vcmp.ge.f32.partialorder %v514, 0.0
  %vm586 = vcmp.ge.f32.partialorder %v517, 0.0
  %vm587 = vcmp.ge.f32.partialorder %v519, 0.0
  %vm588 = vcmp.ge.f32.partialorder %v522, 0.0
  %vm589 = vcmp.ge.f32.partialorder %v524, 0.0
  %v590 = vmul.f32 %v367, 0.2
  %v591 = vmul.f32 %v369, 0.2
  %v592 = vmul.f32 %v372, 0.2
  %v593 = vmul.f32 %v374, 0.2
  %v594 = vmul.f32 %v377, 0.2
  %v595 = vmul.f32 %v379, 0.2
  %v596 = vmul.f32 %v382, 0.2
  %v597 = vmul.f32 %v384, 0.2
  %v598 = vmul.f32 %v387, 0.2
  %v599 = vmul.f32 %v389, 0.2
  %v600 = vmul.f32 %v392, 0.2
  %v601 = vmul.f32 %v394, 0.2
  %v602 = vmul.f32 %v397, 0.2
  %v603 = vmul.f32 %v399, 0.2
  %v604 = vmul.f32 %v402, 0.2
  %v605 = vmul.f32 %v404, 0.2
  %v606 = vmul.f32 %v407, 0.2
  %v607 = vmul.f32 %v409, 0.2
  %v608 = vmul.f32 %v412, 0.2
  %v609 = vmul.f32 %v414, 0.2
  %v610 = vmul.f32 %v417, 0.2
  %v611 = vmul.f32 %v419, 0.2
  %v612 = vmul.f32 %v422, 0.2
  %v613 = vmul.f32 %v424, 0.2
  %v614 = vmul.f32 %v427, 0.2
  %v615 = vmul.f32 %v429, 0.2
  %v616 = vmul.f32 %v432, 0.2
  %v617 = vmul.f32 %v434, 0.2
  %v618 = vmul.f32 %v437, 0.2
  %v619 = vmul.f32 %v439, 0.2
  %v620 = vmul.f32 %v442, 0.2
  %v621 = vmul.f32 %v444, 0.2
  %v622 = vmul.f32 %v447, 0.2
  %v623 = vmul.f32 %v449, 0.2
  %v624 = vmul.f32 %v452, 0.2
  %v625 = vmul.f32 %v454, 0.2
  %v626 = vmul.f32 %v457, 0.2
  %v627 = vmul.f32 %v459, 0.2
  %v628 = vmul.f32 %v462, 0.2
  %v629 = vmul.f32 %v464, 0.2
  %v630 = vmul.f32 %v467, 0.2
  %v631 = vmul.f32 %v469, 0.2
  %v632 = vmul.f32 %v472, 0.2
  %v633 = vmul.f32 %v474, 0.2
  %v634 = vmul.f32 %v477, 0.2
  %v635 = vmul.f32 %v479, 0.2
  %v636 = vmul.f32 %v482, 0.2
  %v637 = vmul.f32 %v484, 0.2
  %v638 = vmul.f32 %v487, 0.2
  %v639 = vmul.f32 %v489, 0.2
  %v640 = vmul.f32 %v492, 0.2
  %v641 = vmul.f32 %v494, 0.2
  %v642 = vmul.f32 %v497, 0.2
  %v643 = vmul.f32 %v499, 0.2
  %v644 = vmul.f32 %v502, 0.2
  %v645 = vmul.f32 %v504, 0.2
  %v646 = vmul.f32 %v507, 0.2
  %v647 = vmul.f32 %v509, 0.2
  %v648 = vmul.f32 %v512, 0.2
  %v649 = vmul.f32 %v514, 0.2
  %v650 = vmul.f32 %v517, 0.2
  %v651 = vmul.f32 %v519, 0.2
  %v652 = vmul.f32 %v522, 0.2
  %v653 = vmul.f32 %v524, 0.2
  %v654 = vsel %vm526, %v367, %v590
  %v655 = vsel %vm527, %v369, %v591
  %v656 = vsel %vm528, %v372, %v592
  %v657 = vsel %vm529, %v374, %v593
  %v658 = vsel %vm530, %v377, %v594
  %v659 = vsel %vm531, %v379, %v595
  %v660 = vsel %vm532, %v382, %v596
  %v661 = vsel %vm533, %v384, %v597
  %v662 = vsel %vm534, %v387, %v598
  %v663 = vsel %vm535, %v389, %v599
  %v664 = vsel %vm536, %v392, %v600
  %v665 = vsel %vm537, %v394, %v601
  %v666 = vsel %vm538, %v397, %v602
  %v667 = vsel %vm539, %v399, %v603
  %v668 = vsel %vm540, %v402, %v604
  %v669 = vsel %vm541, %v404, %v605
  %v670 = vsel %vm542, %v407, %v606
  %v671 = vsel %vm543, %v409, %v607
  %v672 = vsel %vm544, %v412, %v608
  %v673 = vsel %vm545, %v414, %v609
  %v674 = vsel %vm546, %v417, %v610
  %v675 = vsel %vm547, %v419, %v611
  %v676 = vsel %vm548, %v422, %v612
  %v677 = vsel %vm549, %v424, %v613
  %v678 = vsel %vm550, %v427, %v614
  %v679 = vsel %vm551, %v429, %v615
  %v680 = vsel %vm552, %v432, %v616
  %v681 = vsel %vm553, %v434, %v617
  %v682 = vsel %vm554, %v437, %v618
  %v683 = vsel %vm555, %v439, %v619
  %v684 = vsel %vm556, %v442, %v620
  %v685 = vsel %vm557, %v444, %v621
  %v686 = vsel %vm558, %v447, %v622
  %v687 = vsel %vm559, %v449, %v623
  %v688 = vsel %vm560, %v452, %v624
  %v689 = vsel %vm561, %v454, %v625
  %v690 = vsel %vm562, %v457, %v626
  %v691 = vsel %vm563, %v459, %v627
  %v692 = vsel %vm564, %v462, %v628
  %v693 = vsel %vm565, %v464, %v629
  %v694 = vsel %vm566, %v467, %v630
  %v695 = vsel %vm567, %v469, %v631
  %v696 = vsel %vm568, %v472, %v632
  %v697 = vsel %vm569, %v474, %v633
  %v698 = vsel %vm570, %v477, %v634
  %v699 = vsel %vm571, %v479, %v635
  %v700 = vsel %vm572, %v482, %v636
  %v701 = vsel %vm573, %v484, %v637
  %v702 = vsel %vm574, %v487, %v638
  %v703 = vsel %vm575, %v489, %v639
  %v704 = vsel %vm576, %v492, %v640
  %v705 = vsel %vm577, %v494, %v641
  %v706 = vsel %vm578, %v497, %v642
  %v707 = vsel %vm579, %v499, %v643
  %v708 = vsel %vm580, %v502, %v644
  %v709 = vsel %vm581, %v504, %v645
  %v710 = vsel %vm582, %v507, %v646
  %v711 = vsel %vm583, %v509, %v647
  %v712 = vsel %vm584, %v512, %v648
  %v713 = vsel %vm585, %v514, %v649
  %v714 = vsel %vm586, %v517, %v650
  %v715 = vsel %vm587, %v519, %v651
  %v716 = vsel %vm588, %v522, %v652
  %v717 = vsel %vm589, %v524, %v653
  %v718 = vpack.c.bf16 %v654, %v654
  %v719 = vpack.c.bf16 %v655, %v655
  %v720 = vpack.c.bf16 %v656, %v656
  %v721 = vpack.c.bf16 %v657, %v657
  %v722 = vpack.c.bf16 %v658, %v658
  %v723 = vpack.c.bf16 %v659, %v659
  %v724 = vpack.c.bf16 %v660, %v660
  %v725 = vpack.c.bf16 %v661, %v661
  %v726 = vpack.c.bf16 %v662, %v662
  %v727 = vpack.c.bf16 %v663, %v663
  %v728 = vpack.c.bf16 %v664, %v664
  %v729 = vpack.c.bf16 %v665, %v665
  %v730 = vpack.c.bf16 %v666, %v666
  %v731 = vpack.c.bf16 %v667, %v667
  %v732 = vpack.c.bf16 %v668, %v668
  %v733 = vpack.c.bf16 %v669, %v669
  %v734 = vpack.c.bf16 %v670, %v670
  %v735 = vpack.c.bf16 %v671, %v671
  %v736 = vpack.c.bf16 %v672, %v672
  %v737 = vpack.c.bf16 %v673, %v673
  %v738 = vpack.c.bf16 %v674, %v674
  %v739 = vpack.c.bf16 %v675, %v675
  %v740 = vpack.c.bf16 %v676, %v676
  %v741 = vpack.c.bf16 %v677, %v677
  %v742 = vpack.c.bf16 %v678, %v678
  %v743 = vpack.c.bf16 %v679, %v679
  %v744 = vpack.c.bf16 %v680, %v680
  %v745 = vpack.c.bf16 %v681, %v681
  %v746 = vpack.c.bf16 %v682, %v682
  %v747 = vpack.c.bf16 %v683, %v683
  %v748 = vpack.c.bf16 %v684, %v684
  %v749 = vpack.c.bf16 %v685, %v685
  %v750 = vpack.c.bf16 %v686, %v686
  %v751 = vpack.c.bf16 %v687, %v687
  %v752 = vpack.c.bf16 %v688, %v688
  %v753 = vpack.c.bf16 %v689, %v689
  %v754 = vpack.c.bf16 %v690, %v690
  %v755 = vpack.c.bf16 %v691, %v691
  %v756 = vpack.c.bf16 %v692, %v692
  %v757 = vpack.c.bf16 %v693, %v693
  %v758 = vpack.c.bf16 %v694, %v694
  %v759 = vpack.c.bf16 %v695, %v695
  %v760 = vpack.c.bf16 %v696, %v696
  %v761 = vpack.c.bf16 %v697, %v697
  %v762 = vpack.c.bf16 %v698, %v698
  %v763 = vpack.c.bf16 %v699, %v699
  %v764 = vpack.c.bf16 %v700, %v700
  %v765 = vpack.c.bf16 %v701, %v701
  %v766 = vpack.c.bf16 %v702, %v702
  %v767 = vpack.c.bf16 %v703, %v703
  %v768 = vpack.c.bf16 %v704, %v704
  %v769 = vpack.c.bf16 %v705, %v705
  %v770 = vpack.c.bf16 %v706, %v706
  %v771 = vpack.c.bf16 %v707, %v707
  %v772 = vpack.c.bf16 %v708, %v708
  %v773 = vpack.c.bf16 %v709, %v709
  %v774 = vpack.c.bf16 %v710, %v710
  %v775 = vpack.c.bf16 %v711, %v711
  %v776 = vpack.c.bf16 %v712, %v712
  %v777 = vpack.c.bf16 %v713, %v713
  %v778 = vpack.c.bf16 %v714, %v714
  %v779 = vpack.c.bf16 %v715, %v715
  %v780 = vpack.c.bf16 %v716, %v716
  %v781 = vpack.c.bf16 %v717, %v717
  %782 = vst [vmem:[%s2] sm:$0xf] %v718
  %783 = vst [vmem:[%s2 + $0x4] sm:$0xf] %v719
  %784 = vst [vmem:[%s2 + $0x8] sm:$0xf] %v720
  %785 = vst [vmem:[%s2 + $0xc] sm:$0xf] %v721
  %786 = vst [vmem:[%s2 + $0x10] sm:$0xf] %v722
  %787 = vst [vmem:[%s2 + $0x14] sm:$0xf] %v723
  %788 = vst [vmem:[%s2 + $0x18] sm:$0xf] %v724
  %789 = vst [vmem:[%s2 + $0x1c] sm:$0xf] %v725
  %790 = vst [vmem:[%s2 + $0x20] sm:$0xf] %v726
  %791 = vst [vmem:[%s2 + $0x24] sm:$0xf] %v727
  %792 = vst [vmem:[%s2 + $0x28] sm:$0xf] %v728
  %793 = vst [vmem:[%s2 + $0x2c] sm:$0xf] %v729
  %794 = vst [vmem:[%s2 + $0x30] sm:$0xf] %v730
  %795 = vst [vmem:[%s2 + $0x34] sm:$0xf] %v731
  %796 = vst [vmem:[%s2 + $0x38] sm:$0xf] %v732
  %797 = vst [vmem:[%s2 + $0x3c] sm:$0xf] %v733
  %798 = vst [vmem:[%s2 + $0x40] sm:$0xf] %v734
  %799 = vst [vmem:[%s2 + $0x44] sm:$0xf] %v735
  %800 = vst [vmem:[%s2 + $0x48] sm:$0xf] %v736
  %801 = vst [vmem:[%s2 + $0x4c] sm:$0xf] %v737
  %802 = vst [vmem:[%s2 + $0x50] sm:$0xf] %v738
  %803 = vst [vmem:[%s2 + $0x54] sm:$0xf] %v739
  %804 = vst [vmem:[%s2 + $0x58] sm:$0xf] %v740
  %805 = vst [vmem:[%s2 + $0x5c] sm:$0xf] %v741
  %806 = vst [vmem:[%s2 + $0x60] sm:$0xf] %v742
  %807 = vst [vmem:[%s2 + $0x64] sm:$0xf] %v743
  %808 = vst [vmem:[%s2 + $0x68] sm:$0xf] %v744
  %809 = vst [vmem:[%s2 + $0x6c] sm:$0xf] %v745
  %810 = vst [vmem:[%s2 + $0x70] sm:$0xf] %v746
  %811 = vst [vmem:[%s2 + $0x74] sm:$0xf] %v747
  %812 = vst [vmem:[%s2 + $0x78] sm:$0xf] %v748
  %813 = vst [vmem:[%s2 + $0x7c] sm:$0xf] %v749
  %814 = vst [vmem:[%s2 + $0x80] sm:$0xf] %v750
  %815 = vst [vmem:[%s2 + $0x84] sm:$0xf] %v751
  %816 = vst [vmem:[%s2 + $0x88] sm:$0xf] %v752
  %817 = vst [vmem:[%s2 + $0x8c] sm:$0xf] %v753
  %818 = vst [vmem:[%s2 + $0x90] sm:$0xf] %v754
  %819 = vst [vmem:[%s2 + $0x94] sm:$0xf] %v755
  %820 = vst [vmem:[%s2 + $0x98] sm:$0xf] %v756
  %821 = vst [vmem:[%s2 + $0x9c] sm:$0xf] %v757
  %822 = vst [vmem:[%s2 + $0xa0] sm:$0xf] %v758
  %823 = vst [vmem:[%s2 + $0xa4] sm:$0xf] %v759
  %824 = vst [vmem:[%s2 + $0xa8] sm:$0xf] %v760
  %825 = vst [vmem:[%s2 + $0xac] sm:$0xf] %v761
  %826 = vst [vmem:[%s2 + $0xb0] sm:$0xf] %v762
  %827 = vst [vmem:[%s2 + $0xb4] sm:$0xf] %v763
  %828 = vst [vmem:[%s2 + $0xb8] sm:$0xf] %v764
  %829 = vst [vmem:[%s2 + $0xbc] sm:$0xf] %v765
  %830 = vst [vmem:[%s2 + $0xc0] sm:$0xf] %v766
  %831 = vst [vmem:[%s2 + $0xc4] sm:$0xf] %v767
  %832 = vst [vmem:[%s2 + $0xc8] sm:$0xf] %v768
  %833 = vst [vmem:[%s2 + $0xcc] sm:$0xf] %v769
  %834 = vst [vmem:[%s2 + $0xd0] sm:$0xf] %v770
  %835 = vst [vmem:[%s2 + $0xd4] sm:$0xf] %v771
  %836 = vst [vmem:[%s2 + $0xd8] sm:$0xf] %v772
  %837 = vst [vmem:[%s2 + $0xdc] sm:$0xf] %v773
  %838 = vst [vmem:[%s2 + $0xe0] sm:$0xf] %v774
  %839 = vst [vmem:[%s2 + $0xe4] sm:$0xf] %v775
  %840 = vst [vmem:[%s2 + $0xe8] sm:$0xf] %v776
  %841 = vst [vmem:[%s2 + $0xec] sm:$0xf] %v777
  %842 = vst [vmem:[%s2 + $0xf0] sm:$0xf] %v778
  %843 = vst [vmem:[%s2 + $0xf4] sm:$0xf] %v779
  %844 = vst [vmem:[%s2 + $0xf8] sm:$0xf] %v780
  %845 = vst [vmem:[%s2 + $0xfc] sm:$0xf] %v781
  // Predicated region
  $region10: #{forward.4} parent=0 // pred_check
    _
  $region11: #{forward.4} parent=0 // pred_check_branch
    %847 = sbr.rel (0) target = $region13
  $region12: #{forward.4} parent=0 // pred_region
    _
  $region13: #{forward.4} parent=0 // pred_fallthru
    _
  // Predicated region
  $region14: #{forward.4} parent=0 // pred_check
    _
  $region15: #{forward.4} parent=0 // pred_check_branch
    %849 = sbr.rel (0) target = $region17
  $region16: #{forward.4} parent=0 // pred_region
    _
  $region17: #{forward.4} parent=0 // pred_fallthru
    _

// kernel: forward.5
$region0: #{forward.5}
  #allocation0 [shape = 'u32[]', space=smem, size = 0x4, offset = 0x4, fixed_abs, tag = 'smem constant byte address 0x4 - core index']
  #allocation1 [shape = 'u32[72,128]{1,0:T(1,128)}', space=vmem, size = 0x9000, scoped, tag = 'internal scratch']
  %s0 = inlined_call_operand.vmem [shape: bf16[128,128], index: 0, kind: input, shape index: {}]
  %s1 = inlined_call_operand.vmem [shape: bf16[128,128], index: 1, kind: input, shape index: {}]
  %s2 = inlined_call_operand.vmem [shape: f32[1,128], index: 2, kind: input, shape index: {}]
  %s3 = inlined_call_operand.vmem [shape: f32[1,128], index: 3, kind: input, shape index: {}]
  %s4 = inlined_call_operand.vmem [shape: bf16[128,128], index: 4, kind: output, shape index: {}]
  %s5 = sld [smem:[#allocation0]]
  $region26: #{forward.5} parent=0
    _
  %s7 = ssub.s32 1, %s5
  %s8 = scalar_select 0, %s7, %s5
  // Predicated region
  $region2: #{forward.5} parent=0 // pred_check
    _
  $region3: #{forward.5} parent=0 // pred_check_branch
    %10 = sbr.rel (0) target = $region5
  $region4: #{forward.5} parent=0 // pred_region
    _
  $region5: #{forward.5} parent=0 // pred_fallthru
    _
  // Predicated region
  $region6: #{forward.5} parent=0 // pred_check
    _
  $region7: #{forward.5} parent=0 // pred_check_branch
    %12 = sbr.rel (0) target = $region9
  $region8: #{forward.5} parent=0 // pred_region
    _
  $region9: #{forward.5} parent=0 // pred_fallthru
    _
  // Predicated region
  $region10: #{forward.5} parent=0 // pred_check
    _
  $region11: #{forward.5} parent=0 // pred_check_branch
    %14 = sbr.rel (0) target = $region13
  $region12: #{forward.5} parent=0 // pred_region
    _
  $region13: #{forward.5} parent=0 // pred_fallthru
    _
  // Predicated region
  $region14: #{forward.5} parent=0 // pred_check
    _
  $region15: #{forward.5} parent=0 // pred_check_branch
    %16 = sbr.rel (0) target = $region17
  $region16: #{forward.5} parent=0 // pred_region
    _
  $region17: #{forward.5} parent=0 // pred_fallthru
    _
  %v17 = vld [vmem:[%s0] sm:$0xf]
  %v18 = vld [vmem:[%s0 + $0x4] sm:$0xf]
  %v19 = vld [vmem:[%s0 + $0x8] sm:$0xf]
  %v20 = vld [vmem:[%s0 + $0xc] sm:$0xf]
  %v21 = vld [vmem:[%s0 + $0x10] sm:$0xf]
  %v22 = vld [vmem:[%s0 + $0x14] sm:$0xf]
  %v23 = vld [vmem:[%s0 + $0x18] sm:$0xf]
  %v24 = vld [vmem:[%s0 + $0x1c] sm:$0xf]
  %v25 = vld [vmem:[%s0 + $0x20] sm:$0xf]
  %v26 = vld [vmem:[%s0 + $0x24] sm:$0xf]
  %v27 = vld [vmem:[%s0 + $0x28] sm:$0xf]
  %v28 = vld [vmem:[%s0 + $0x2c] sm:$0xf]
  %v29 = vld [vmem:[%s0 + $0x30] sm:$0xf]
  %v30 = vld [vmem:[%s0 + $0x34] sm:$0xf]
  %v31 = vld [vmem:[%s0 + $0x38] sm:$0xf]
  %v32 = vld [vmem:[%s0 + $0x3c] sm:$0xf]
  %v33 = vld [vmem:[%s1] sm:$0xf]
  %v34 = vld [vmem:[%s1 + $0x4] sm:$0xf]
  %v35 = vld [vmem:[%s1 + $0x8] sm:$0xf]
  %v36 = vld [vmem:[%s1 + $0xc] sm:$0xf]
  %v37 = vld [vmem:[%s1 + $0x10] sm:$0xf]
  %v38 = vld [vmem:[%s1 + $0x14] sm:$0xf]
  %v39 = vld [vmem:[%s1 + $0x18] sm:$0xf]
  %v40 = vld [vmem:[%s1 + $0x1c] sm:$0xf]
  %v41 = vld [vmem:[%s1 + $0x20] sm:$0xf]
  %v42 = vld [vmem:[%s1 + $0x24] sm:$0xf]
  %v43 = vld [vmem:[%s1 + $0x28] sm:$0xf]
  %v44 = vld [vmem:[%s1 + $0x2c] sm:$0xf]
  %v45 = vld [vmem:[%s1 + $0x30] sm:$0xf]
  %v46 = vld [vmem:[%s1 + $0x34] sm:$0xf]
  %v47 = vld [vmem:[%s1 + $0x38] sm:$0xf]
  %v48 = vld [vmem:[%s1 + $0x3c] sm:$0xf]
  %v65 = vunpack.c.l.b16 %v17
  %v66 = vunpack.c.l.b16 %v18
  %v67 = vunpack.c.l.b16 %v19
  %v68 = vunpack.c.l.b16 %v20
  %v69 = vunpack.c.l.b16 %v21
  %v70 = vunpack.c.l.b16 %v22
  %v71 = vunpack.c.l.b16 %v23
  %v72 = vunpack.c.l.b16 %v24
  %v73 = vunpack.c.l.b16 %v25
  %v74 = vunpack.c.l.b16 %v26
  %v75 = vunpack.c.l.b16 %v27
  %v76 = vunpack.c.l.b16 %v28
  %v77 = vunpack.c.l.b16 %v29
  %v78 = vunpack.c.l.b16 %v30
  %v79 = vunpack.c.l.b16 %v31
  %v80 = vunpack.c.l.b16 %v32
  %v81 = vpack.c.b16 %v66, %v65
  %v82 = vpack.c.b16 %v68, %v67
  %v83 = vpack.c.b16 %v70, %v69
  %v84 = vpack.c.b16 %v72, %v71
  %v85 = vpack.c.b16 %v74, %v73
  %v86 = vpack.c.b16 %v76, %v75
  %v87 = vpack.c.b16 %v78, %v77
  %v88 = vpack.c.b16 %v80, %v79
  %v113 = vunpack.c.l.b16 %v33
  %v114 = vunpack.c.l.b16 %v34
  %v115 = vunpack.c.l.b16 %v35
  %v116 = vunpack.c.l.b16 %v36
  %v117 = vunpack.c.l.b16 %v37
  %v118 = vunpack.c.l.b16 %v38
  %v119 = vunpack.c.l.b16 %v39
  %v120 = vunpack.c.l.b16 %v40
  %v121 = vunpack.c.l.b16 %v41
  %v122 = vunpack.c.l.b16 %v42
  %v123 = vunpack.c.l.b16 %v43
  %v124 = vunpack.c.l.b16 %v44
  %v125 = vunpack.c.l.b16 %v45
  %v126 = vunpack.c.l.b16 %v46
  %v127 = vunpack.c.l.b16 %v47
  %v128 = vunpack.c.l.b16 %v48
  %v129 = vpack.c.b16 %v114, %v113
  %v130 = vpack.c.b16 %v116, %v115
  %v131 = vpack.c.b16 %v118, %v117
  %v132 = vpack.c.b16 %v120, %v119
  %v133 = vpack.c.b16 %v122, %v121
  %v134 = vpack.c.b16 %v124, %v123
  %v135 = vpack.c.b16 %v126, %v125
  %v136 = vpack.c.b16 %v128, %v127
  %145 = vmatpush.bf16.msra.mxu0 %v136
  %146 = vmatpush.bf16.msra.mxu0 %v135
  %147 = vmatpush.bf16.msra.mxu0 %v134
  %148 = vmatpush.bf16.msra.mxu0 %v133
  %149 = vmatpush.bf16.msra.mxu0 %v132
  %150 = vmatpush.bf16.msra.mxu0 %v131
  %151 = vmatpush.bf16.msra.mxu0 %v130
  %152 = vmatpush.bf16.msra.mxu0 %v129
  %153 = vmatmul.bf16.gmra.mxu0 %v81
  %v154 = vpop.f32.mrf.mxu0
  %v155 = vadd.f32 0.0, %v154
  %v156 = vpop.f32.mrf.mxu0
  %v157 = vadd.f32 0.0, %v156
  %158 = vmatmul.bf16.gmra.mxu0 %v82
  %v159 = vpop.f32.mrf.mxu0
  %v160 = vadd.f32 0.0, %v159
  %v161 = vpop.f32.mrf.mxu0
  %v162 = vadd.f32 0.0, %v161
  %163 = vmatmul.bf16.gmra.mxu0 %v83
  %v164 = vpop.f32.mrf.mxu0
  %v165 = vadd.f32 0.0, %v164
  %v166 = vpop.f32.mrf.mxu0
  %v167 = vadd.f32 0.0, %v166
  %168 = vmatmul.bf16.gmra.mxu0 %v84
  %v169 = vpop.f32.mrf.mxu0
  %v170 = vadd.f32 0.0, %v169
  %v171 = vpop.f32.mrf.mxu0
  %v172 = vadd.f32 0.0, %v171
  %173 = vmatmul.bf16.gmra.mxu0 %v85
  %v174 = vpop.f32.mrf.mxu0
  %v175 = vadd.f32 0.0, %v174
  %v176 = vpop.f32.mrf.mxu0
  %v177 = vadd.f32 0.0, %v176
  %178 = vmatmul.bf16.gmra.mxu0 %v86
  %v179 = vpop.f32.mrf.mxu0
  %v180 = vadd.f32 0.0, %v179
  %v181 = vpop.f32.mrf.mxu0
  %v182 = vadd.f32 0.0, %v181
  %183 = vmatmul.bf16.gmra.mxu0 %v87
  %v184 = vpop.f32.mrf.mxu0
  %v185 = vadd.f32 0.0, %v184
  %v186 = vpop.f32.mrf.mxu0
  %v187 = vadd.f32 0.0, %v186
  %188 = vmatmul.bf16.gmra.mxu0 %v88
  %v189 = vpop.f32.mrf.mxu0
  %v190 = vadd.f32 0.0, %v189
  %v191 = vpop.f32.mrf.mxu0
  %v192 = vadd.f32 0.0, %v191
  %193 = vdwg.mxu0
  %v194 = vadd.f32 %v155, %v157
  %v195 = vadd.f32 %v194, %v160
  %v196 = vadd.f32 %v195, %v162
  %v197 = vadd.f32 %v196, %v165
  %v198 = vadd.f32 %v197, %v167
  %v199 = vadd.f32 %v198, %v170
  %v200 = vadd.f32 %v199, %v172
  %v201 = vadd.f32 %v200, %v175
  %v202 = vadd.f32 %v201, %v177
  %v203 = vadd.f32 %v202, %v180
  %v204 = vadd.f32 %v203, %v182
  %v205 = vadd.f32 %v204, %v185
  %v206 = vadd.f32 %v205, %v187
  %v207 = vadd.f32 %v206, %v190
  %v208 = vadd.f32 %v207, %v192
  %v209 = vrot.slane %v208, 4
  %v210 = vadd.f32 %v208, %v209
  %v211 = vrot.slane %v210, 2
  %v212 = vadd.f32 %v210, %v211
  %v213 = vrot.slane %v212, 1
  %v214 = vadd.f32 %v212, %v213
  %v215 = vmul.f32 %v214, 0.0078125
  %v216 = vmul.f32 %v155, %v155
  %v217 = vmul.f32 %v157, %v157
  %v218 = vmul.f32 %v160, %v160
  %v219 = vmul.f32 %v162, %v162
  %v220 = vmul.f32 %v165, %v165
  %v221 = vmul.f32 %v167, %v167
  %v222 = vmul.f32 %v170, %v170
  %v223 = vmul.f32 %v172, %v172
  %v224 = vmul.f32 %v175, %v175
  %v225 = vmul.f32 %v177, %v177
  %v226 = vmul.f32 %v180, %v180
  %v227 = vmul.f32 %v182, %v182
  %v228 = vmul.f32 %v185, %v185
  %v229 = vmul.f32 %v187, %v187
  %v230 = vmul.f32 %v190, %v190
  %v231 = vmul.f32 %v192, %v192
  %v232 = vadd.f32 %v216, %v217
  %v233 = vadd.f32 %v232, %v218
  %v234 = vadd.f32 %v233, %v219
  %v235 = vadd.f32 %v234, %v220
  %v236 = vadd.f32 %v235, %v221
  %v237 = vadd.f32 %v236, %v222
  %v238 = vadd.f32 %v237, %v223
  %v239 = vadd.f32 %v238, %v224
  %v240 = vadd.f32 %v239, %v225
  %v241 = vadd.f32 %v240, %v226
  %v242 = vadd.f32 %v241, %v227
  %v243 = vadd.f32 %v242, %v228
  %v244 = vadd.f32 %v243, %v229
  %v245 = vadd.f32 %v244, %v230
  %v246 = vadd.f32 %v245, %v231
  %v247 = vrot.slane %v246, 4
  %v248 = vadd.f32 %v246, %v247
  %v249 = vrot.slane %v248, 2
  %v250 = vadd.f32 %v248, %v249
  %v251 = vrot.slane %v250, 1
  %v252 = vadd.f32 %v250, %v251
  %v253 = vmul.f32 %v252, 0.0078125
  %v254 = vmul.f32 %v215, %v215
  %v255 = vsub.f32 %v253, %v254
  %v256 = vmax.f32 %v255, 0.0
  %v257 = vld [vmem:[%s2] sm:$0x1]
  %v258 = vadd.f32 %v256, 1e-05
  %v259 = vrsqrt.pop %v258
  %v260 = vmul.f32 %v259, %v258
  %v261 = vmul.f32 %v260, %v259
  %v262 = vmul.f32 0.5, %v261
  %v263 = vsub.f32 1.5, %v262
  %v264 = vmul.f32 %v259, %v263
  %vm265 = vweird.f32 %v258
  %vm266 = vweird.f32 %v259
  %vm267 = vmor %vm265, %vm266
  %v268 = vsel %vm267, %v259, %v264
  %v269 = vmul.f32 %v257, %v268
  %v270 = vld [vmem:[%s3] sm:$0x1]
  %v271 = vmul.f32 %v215, %v269
  %v272 = vsub.f32 %v270, %v271
  %v274 = vperm.slane %v269, 0
  %v276 = vmul.f32 %v155, %v274
  %v277 = vmul.f32 %v157, %v274
  %v278 = vmul.f32 %v160, %v274
  %v279 = vmul.f32 %v162, %v274
  %v280 = vmul.f32 %v165, %v274
  %v281 = vmul.f32 %v167, %v274
  %v282 = vmul.f32 %v170, %v274
  %v283 = vmul.f32 %v172, %v274
  %v284 = vmul.f32 %v175, %v274
  %v285 = vmul.f32 %v177, %v274
  %v286 = vmul.f32 %v180, %v274
  %v287 = vmul.f32 %v182, %v274
  %v288 = vmul.f32 %v185, %v274
  %v289 = vmul.f32 %v187, %v274
  %v290 = vmul.f32 %v190, %v274
  %v291 = vmul.f32 %v192, %v274
  %v293 = vperm.slane %v272, 0
  %v295 = vadd.f32 %v276, %v293
  %v296 = vadd.f32 %v277, %v293
  %v297 = vadd.f32 %v278, %v293
  %v298 = vadd.f32 %v279, %v293
  %v299 = vadd.f32 %v280, %v293
  %v300 = vadd.f32 %v281, %v293
  %v301 = vadd.f32 %v282, %v293
  %v302 = vadd.f32 %v283, %v293
  %v303 = vadd.f32 %v284, %v293
  %v304 = vadd.f32 %v285, %v293
  %v305 = vadd.f32 %v286, %v293
  %v306 = vadd.f32 %v287, %v293
  %v307 = vadd.f32 %v288, %v293
  %v308 = vadd.f32 %v289, %v293
  %v309 = vadd.f32 %v290, %v293
  %v310 = vadd.f32 %v291, %v293
  %vm311 = vcmp.ge.f32.partialorder %v295, 0.0
  %vm312 = vcmp.ge.f32.partialorder %v296, 0.0
  %vm313 = vcmp.ge.f32.partialorder %v297, 0.0
  %vm314 = vcmp.ge.f32.partialorder %v298, 0.0
  %vm315 = vcmp.ge.f32.partialorder %v299, 0.0
  %vm316 = vcmp.ge.f32.partialorder %v300, 0.0
  %vm317 = vcmp.ge.f32.partialorder %v301, 0.0
  %vm318 = vcmp.ge.f32.partialorder %v302, 0.0
  %vm319 = vcmp.ge.f32.partialorder %v303, 0.0
  %vm320 = vcmp.ge.f32.partialorder %v304, 0.0
  %vm321 = vcmp.ge.f32.partialorder %v305, 0.0
  %vm322 = vcmp.ge.f32.partialorder %v306, 0.0
  %vm323 = vcmp.ge.f32.partialorder %v307, 0.0
  %vm324 = vcmp.ge.f32.partialorder %v308, 0.0
  %vm325 = vcmp.ge.f32.partialorder %v309, 0.0
  %vm326 = vcmp.ge.f32.partialorder %v310, 0.0
  %v327 = vmul.f32 %v295, 0.2
  %v328 = vmul.f32 %v296, 0.2
  %v329 = vmul.f32 %v297, 0.2
  %v330 = vmul.f32 %v298, 0.2
  %v331 = vmul.f32 %v299, 0.2
  %v332 = vmul.f32 %v300, 0.2
  %v333 = vmul.f32 %v301, 0.2
  %v334 = vmul.f32 %v302, 0.2
  %v335 = vmul.f32 %v303, 0.2
  %v336 = vmul.f32 %v304, 0.2
  %v337 = vmul.f32 %v305, 0.2
  %v338 = vmul.f32 %v306, 0.2
  %v339 = vmul.f32 %v307, 0.2
  %v340 = vmul.f32 %v308, 0.2
  %v341 = vmul.f32 %v309, 0.2
  %v342 = vmul.f32 %v310, 0.2
  %v343 = vsel %vm311, %v295, %v327
  %v344 = vsel %vm312, %v296, %v328
  %v345 = vsel %vm313, %v297, %v329
  %v346 = vsel %vm314, %v298, %v330
  %v347 = vsel %vm315, %v299, %v331
  %v348 = vsel %vm316, %v300, %v332
  %v349 = vsel %vm317, %v301, %v333
  %v350 = vsel %vm318, %v302, %v334
  %v351 = vsel %vm319, %v303, %v335
  %v352 = vsel %vm320, %v304, %v336
  %v353 = vsel %vm321, %v305, %v337
  %v354 = vsel %vm322, %v306, %v338
  %v355 = vsel %vm323, %v307, %v339
  %v356 = vsel %vm324, %v308, %v340
  %v357 = vsel %vm325, %v309, %v341
  %v358 = vsel %vm326, %v310, %v342
  %v359 = vpack.c.bf16 %v343, %v343
  %v360 = vpack.c.bf16 %v344, %v344
  %v361 = vpack.c.bf16 %v345, %v345
  %v362 = vpack.c.bf16 %v346, %v346
  %v363 = vpack.c.bf16 %v347, %v347
  %v364 = vpack.c.bf16 %v348, %v348
  %v365 = vpack.c.bf16 %v349, %v349
  %v366 = vpack.c.bf16 %v350, %v350
  %v367 = vpack.c.bf16 %v351, %v351
  %v368 = vpack.c.bf16 %v352, %v352
  %v369 = vpack.c.bf16 %v353, %v353
  %v370 = vpack.c.bf16 %v354, %v354
  %v371 = vpack.c.bf16 %v355, %v355
  %v372 = vpack.c.bf16 %v356, %v356
  %v373 = vpack.c.bf16 %v357, %v357
  %v374 = vpack.c.bf16 %v358, %v358
  %375 = vst [vmem:[%s4] sm:$0xf] %v359
  %376 = vst [vmem:[%s4 + $0x4] sm:$0xf] %v360
  %377 = vst [vmem:[%s4 + $0x8] sm:$0xf] %v361
  %378 = vst [vmem:[%s4 + $0xc] sm:$0xf] %v362
  %379 = vst [vmem:[%s4 + $0x10] sm:$0xf] %v363
  %380 = vst [vmem:[%s4 + $0x14] sm:$0xf] %v364
  %381 = vst [vmem:[%s4 + $0x18] sm:$0xf] %v365
  %382 = vst [vmem:[%s4 + $0x1c] sm:$0xf] %v366
  %383 = vst [vmem:[%s4 + $0x20] sm:$0xf] %v367
  %384 = vst [vmem:[%s4 + $0x24] sm:$0xf] %v368
  %385 = vst [vmem:[%s4 + $0x28] sm:$0xf] %v369
  %386 = vst [vmem:[%s4 + $0x2c] sm:$0xf] %v370
  %387 = vst [vmem:[%s4 + $0x30] sm:$0xf] %v371
  %388 = vst [vmem:[%s4 + $0x34] sm:$0xf] %v372
  %389 = vst [vmem:[%s4 + $0x38] sm:$0xf] %v373
  %390 = vst [vmem:[%s4 + $0x3c] sm:$0xf] %v374
  // Predicated region
  $region18: #{forward.5} parent=0 // pred_check
    _
  $region19: #{forward.5} parent=0 // pred_check_branch
    %392 = sbr.rel (0) target = $region21
  $region20: #{forward.5} parent=0 // pred_region
    _
  $region21: #{forward.5} parent=0 // pred_fallthru
    _
  // Predicated region
  $region22: #{forward.5} parent=0 // pred_check
    _
  $region23: #{forward.5} parent=0 // pred_check_branch
    %394 = sbr.rel (0) target = $region25
  $region24: #{forward.5} parent=0 // pred_region
    _
  $region25: #{forward.5} parent=0 // pred_fallthru
    _

// kernel: forward.6
$region0: #{forward.6}
  #allocation0 [shape = 'u32[]', space=smem, size = 0x4, offset = 0x4, fixed_abs, tag = 'smem constant byte address 0x4 - core index']
  #allocation1 [shape = 'u32[72,128]{1,0:T(1,128)}', space=vmem, size = 0x9000, scoped, tag = 'internal scratch']
  %s0 = inlined_call_operand.vmem [shape: bf16[32,256], index: 0, kind: input, shape index: {}]
  %s1 = inlined_call_operand.vmem [shape: bf16[256,128], index: 1, kind: input, shape index: {}]
  %s2 = inlined_call_operand.vmem [shape: f32[1,128], index: 2, kind: input, shape index: {}]
  %s3 = inlined_call_operand.vmem [shape: f32[1,128], index: 3, kind: input, shape index: {}]
  %s4 = inlined_call_operand.vmem [shape: bf16[32,128], index: 4, kind: output, shape index: {}]
  %s5 = sld [smem:[#allocation0]]
  $region26: #{forward.6} parent=0
    _
  %s7 = ssub.s32 1, %s5
  %s8 = scalar_select 0, %s7, %s5
  // Predicated region
  $region2: #{forward.6} parent=0 // pred_check
    _
  $region3: #{forward.6} parent=0 // pred_check_branch
    %10 = sbr.rel (0) target = $region5
  $region4: #{forward.6} parent=0 // pred_region
    _
  $region5: #{forward.6} parent=0 // pred_fallthru
    _
  // Predicated region
  $region6: #{forward.6} parent=0 // pred_check
    _
  $region7: #{forward.6} parent=0 // pred_check_branch
    %12 = sbr.rel (0) target = $region9
  $region8: #{forward.6} parent=0 // pred_region
    _
  $region9: #{forward.6} parent=0 // pred_fallthru
    _
  // Predicated region
  $region10: #{forward.6} parent=0 // pred_check
    _
  $region11: #{forward.6} parent=0 // pred_check_branch
    %14 = sbr.rel (0) target = $region13
  $region12: #{forward.6} parent=0 // pred_region
    _
  $region13: #{forward.6} parent=0 // pred_fallthru
    _
  // Predicated region
  $region14: #{forward.6} parent=0 // pred_check
    _
  $region15: #{forward.6} parent=0 // pred_check_branch
    %16 = sbr.rel (0) target = $region17
  $region16: #{forward.6} parent=0 // pred_region
    _
  $region17: #{forward.6} parent=0 // pred_fallthru
    _
  %v17 = vld [vmem:[%s0] sm:$0xff]
  %v18 = vld [vmem:[%s0 + $0x8] sm:$0xff]
  %v19 = vld [vmem:[%s0 + $0x10] sm:$0xff]
  %v20 = vld [vmem:[%s0 + $0x18] sm:$0xff]
  %v21 = vld [vmem:[%s1] sm:$0xf]
  %v22 = vld [vmem:[%s1 + $0x4] sm:$0xf]
  %v23 = vld [vmem:[%s1 + $0x8] sm:$0xf]
  %v24 = vld [vmem:[%s1 + $0xc] sm:$0xf]
  %v25 = vld [vmem:[%s1 + $0x10] sm:$0xf]
  %v26 = vld [vmem:[%s1 + $0x14] sm:$0xf]
  %v27 = vld [vmem:[%s1 + $0x18] sm:$0xf]
  %v28 = vld [vmem:[%s1 + $0x1c] sm:$0xf]
  %v29 = vld [vmem:[%s1 + $0x20] sm:$0xf]
  %v30 = vld [vmem:[%s1 + $0x24] sm:$0xf]
  %v31 = vld [vmem:[%s1 + $0x28] sm:$0xf]
  %v32 = vld [vmem:[%s1 + $0x2c] sm:$0xf]
  %v33 = vld [vmem:[%s1 + $0x30] sm:$0xf]
  %v34 = vld [vmem:[%s1 + $0x34] sm:$0xf]
  %v35 = vld [vmem:[%s1 + $0x38] sm:$0xf]
  %v36 = vld [vmem:[%s1 + $0x3c] sm:$0xf]
  %v37 = vld [vmem:[%s1 + $0x40] sm:$0xf]
  %v38 = vld [vmem:[%s1 + $0x44] sm:$0xf]
  %v39 = vld [vmem:[%s1 + $0x48] sm:$0xf]
  %v40 = vld [vmem:[%s1 + $0x4c] sm:$0xf]
  %v41 = vld [vmem:[%s1 + $0x50] sm:$0xf]
  %v42 = vld [vmem:[%s1 + $0x54] sm:$0xf]
  %v43 = vld [vmem:[%s1 + $0x58] sm:$0xf]
  %v44 = vld [vmem:[%s1 + $0x5c] sm:$0xf]
  %v45 = vld [vmem:[%s1 + $0x60] sm:$0xf]
  %v46 = vld [vmem:[%s1 + $0x64] sm:$0xf]
  %v47 = vld [vmem:[%s1 + $0x68] sm:$0xf]
  %v48 = vld [vmem:[%s1 + $0x6c] sm:$0xf]
  %v49 = vld [vmem:[%s1 + $0x70] sm:$0xf]
  %v50 = vld [vmem:[%s1 + $0x74] sm:$0xf]
  %v51 = vld [vmem:[%s1 + $0x78] sm:$0xf]
  %v52 = vld [vmem:[%s1 + $0x7c] sm:$0xf]
  %v57 = vunpack.c.l.b16 %v17
  %v58 = vunpack.c.h.b16 %v17
  %v59 = vunpack.c.l.b16 %v18
  %v60 = vunpack.c.h.b16 %v18
  %v61 = vunpack.c.l.b16 %v19
  %v62 = vunpack.c.h.b16 %v19
  %v63 = vunpack.c.l.b16 %v20
  %v64 = vunpack.c.h.b16 %v20
  %v65 = vpack.c.b16 %v59, %v57
  %v66 = vpack.c.b16 %v60, %v58
  %v67 = vpack.c.b16 %v63, %v61
  %v68 = vpack.c.b16 %v64, %v62
  %v105 = vunpack.c.l.b16 %v21
  %v106 = vunpack.c.l.b16 %v22
  %v107 = vunpack.c.l.b16 %v23
  %v108 = vunpack.c.l.b16 %v24
  %v109 = vunpack.c.l.b16 %v25
  %v110 = vunpack.c.l.b16 %v26
  %v111 = vunpack.c.l.b16 %v27
  %v112 = vunpack.c.l.b16 %v28
  %v113 = vunpack.c.l.b16 %v29
  %v114 = vunpack.c.l.b16 %v30
  %v115 = vunpack.c.l.b16 %v31
  %v116 = vunpack.c.l.b16 %v32
  %v117 = vunpack.c.l.b16 %v33
  %v118 = vunpack.c.l.b16 %v34
  %v119 = vunpack.c.l.b16 %v35
  %v120 = vunpack.c.l.b16 %v36
  %v121 = vunpack.c.l.b16 %v37
  %v122 = vunpack.c.l.b16 %v38
  %v123 = vunpack.c.l.b16 %v39
  %v124 = vunpack.c.l.b16 %v40
  %v125 = vunpack.c.l.b16 %v41
  %v126 = vunpack.c.l.b16 %v42
  %v127 = vunpack.c.l.b16 %v43
  %v128 = vunpack.c.l.b16 %v44
  %v129 = vunpack.c.l.b16 %v45
  %v130 = vunpack.c.l.b16 %v46
  %v131 = vunpack.c.l.b16 %v47
  %v132 = vunpack.c.l.b16 %v48
  %v133 = vunpack.c.l.b16 %v49
  %v134 = vunpack.c.l.b16 %v50
  %v135 = vunpack.c.l.b16 %v51
  %v136 = vunpack.c.l.b16 %v52
  %v137 = vpack.c.b16 %v106, %v105
  %v138 = vpack.c.b16 %v108, %v107
  %v139 = vpack.c.b16 %v110, %v109
  %v140 = vpack.c.b16 %v112, %v111
  %v141 = vpack.c.b16 %v114, %v113
  %v142 = vpack.c.b16 %v116, %v115
  %v143 = vpack.c.b16 %v118, %v117
  %v144 = vpack.c.b16 %v120, %v119
  %v145 = vpack.c.b16 %v122, %v121
  %v146 = vpack.c.b16 %v124, %v123
  %v147 = vpack.c.b16 %v126, %v125
  %v148 = vpack.c.b16 %v128, %v127
  %v149 = vpack.c.b16 %v130, %v129
  %v150 = vpack.c.b16 %v132, %v131
  %v151 = vpack.c.b16 %v134, %v133
  %v152 = vpack.c.b16 %v136, %v135
  %169 = vmatpush.bf16.msra.mxu0 %v144
  %170 = vmatpush.bf16.msra.mxu0 %v143
  %171 = vmatpush.bf16.msra.mxu0 %v142
  %172 = vmatpush.bf16.msra.mxu0 %v141
  %173 = vmatpush.bf16.msra.mxu0 %v140
  %174 = vmatpush.bf16.msra.mxu0 %v139
  %175 = vmatpush.bf16.msra.mxu0 %v138
  %176 = vmatpush.bf16.msra.mxu0 %v137
  %177 = vmatmul.bf16.gmra.mxu0 %v65
  %v178 = vpop.f32.mrf.mxu0
  %v179 = vadd.f32 0.0, %v178
  %v180 = vpop.f32.mrf.mxu0
  %v181 = vadd.f32 0.0, %v180
  %182 = vmatmul.bf16.gmra.mxu0 %v67
  %v183 = vpop.f32.mrf.mxu0
  %v184 = vadd.f32 0.0, %v183
  %v185 = vpop.f32.mrf.mxu0
  %v186 = vadd.f32 0.0, %v185
  %187 = vdwg.mxu0
  %188 = vmatpush.bf16.msra.mxu0 %v152
  %189 = vmatpush.bf16.msra.mxu0 %v151
  %190 = vmatpush.bf16.msra.mxu0 %v150
  %191 = vmatpush.bf16.msra.mxu0 %v149
  %192 = vmatpush.bf16.msra.mxu0 %v148
  %193 = vmatpush.bf16.msra.mxu0 %v147
  %194 = vmatpush.bf16.msra.mxu0 %v146
  %195 = vmatpush.bf16.msra.mxu0 %v145
  %196 = vmatmul.bf16.gmra.mxu0 %v66
  %v197 = vpop.f32.mrf.mxu0
  %v198 = vadd.f32 %v179, %v197
  %v199 = vpop.f32.mrf.mxu0
  %v200 = vadd.f32 %v181, %v199
  %201 = vmatmul.bf16.gmra.mxu0 %v68
  %v202 = vpop.f32.mrf.mxu0
  %v203 = vadd.f32 %v184, %v202
  %v204 = vpop.f32.mrf.mxu0
  %v205 = vadd.f32 %v186, %v204
  %206 = vdwg.mxu0
  %v207 = vadd.f32 %v198, %v200
  %v208 = vadd.f32 %v207, %v203
  %v209 = vadd.f32 %v208, %v205
  %v210 = vrot.slane %v209, 4
  %v211 = vadd.f32 %v209, %v210
  %v212 = vrot.slane %v211, 2
  %v213 = vadd.f32 %v211, %v212
  %v214 = vrot.slane %v213, 1
  %v215 = vadd.f32 %v213, %v214
  %v216 = vmul.f32 %v215, 0.03125
  %v217 = vmul.f32 %v198, %v198
  %v218 = vmul.f32 %v200, %v200
  %v219 = vmul.f32 %v203, %v203
  %v220 = vmul.f32 %v205, %v205
  %v221 = vadd.f32 %v217, %v218
  %v222 = vadd.f32 %v221, %v219
  %v223 = vadd.f32 %v222, %v220
  %v224 = vrot.slane %v223, 4
  %v225 = vadd.f32 %v223, %v224
  %v226 = vrot.slane %v225, 2
  %v227 = vadd.f32 %v225, %v226
  %v228 = vrot.slane %v227, 1
  %v229 = vadd.f32 %v227, %v228
  %v230 = vmul.f32 %v229, 0.03125
  %v231 = vmul.f32 %v216, %v216
  %v232 = vsub.f32 %v230, %v231
  %v233 = vmax.f32 %v232, 0.0
  %v234 = vld [vmem:[%s2] sm:$0x1]
  %v235 = vadd.f32 %v233, 1e-05
  %v236 = vrsqrt.pop %v235
  %v237 = vmul.f32 %v236, %v235
  %v238 = vmul.f32 %v237, %v236
  %v239 = vmul.f32 0.5, %v238
  %v240 = vsub.f32 1.5, %v239
  %v241 = vmul.f32 %v236, %v240
  %vm242 = vweird.f32 %v235
  %vm243 = vweird.f32 %v236
  %vm244 = vmor %vm242, %vm243
  %v245 = vsel %vm244, %v236, %v241
  %v246 = vmul.f32 %v234, %v245
  %v247 = vld [vmem:[%s3] sm:$0x1]
  %v248 = vmul.f32 %v216, %v246
  %v249 = vsub.f32 %v247, %v248
  %v251 = vperm.slane %v246, 0
  %v253 = vmul.f32 %v198, %v251
  %v254 = vmul.f32 %v200, %v251
  %v255 = vmul.f32 %v203, %v251
  %v256 = vmul.f32 %v205, %v251
  %v258 = vperm.slane %v249, 0
  %v260 = vadd.f32 %v253, %v258
  %v261 = vadd.f32 %v254, %v258
  %v262 = vadd.f32 %v255, %v258
  %v263 = vadd.f32 %v256, %v258
  %vm264 = vcmp.ge.f32.partialorder %v260, 0.0
  %vm265 = vcmp.ge.f32.partialorder %v261, 0.0
  %vm266 = vcmp.ge.f32.partialorder %v262, 0.0
  %vm267 = vcmp.ge.f32.partialorder %v263, 0.0
  %v268 = vmul.f32 %v260, 0.2
  %v269 = vmul.f32 %v261, 0.2
  %v270 = vmul.f32 %v262, 0.2
  %v271 = vmul.f32 %v263, 0.2
  %v272 = vsel %vm264, %v260, %v268
  %v273 = vsel %vm265, %v261, %v269
  %v274 = vsel %vm266, %v262, %v270
  %v275 = vsel %vm267, %v263, %v271
  %v276 = vpack.c.bf16 %v272, %v272
  %v277 = vpack.c.bf16 %v273, %v273
  %v278 = vpack.c.bf16 %v274, %v274
  %v279 = vpack.c.bf16 %v275, %v275
  %280 = vst [vmem:[%s4] sm:$0xf] %v276
  %281 = vst [vmem:[%s4 + $0x4] sm:$0xf] %v277
  %282 = vst [vmem:[%s4 + $0x8] sm:$0xf] %v278
  %283 = vst [vmem:[%s4 + $0xc] sm:$0xf] %v279
  // Predicated region
  $region18: #{forward.6} parent=0 // pred_check
    _
  $region19: #{forward.6} parent=0 // pred_check_branch
    %285 = sbr.rel (0) target = $region21
  $region20: #{forward.6} parent=0 // pred_region
    _
  $region21: #{forward.6} parent=0 // pred_fallthru
    _
  // Predicated region
  $region22: #{forward.6} parent=0 // pred_check
    _
  $region23: #{forward.6} parent=0 // pred_check_branch
    %287 = sbr.rel (0) target = $region25
  $region24: #{forward.6} parent=0 // pred_region
    _
  $region25: #{forward.6} parent=0 // pred_fallthru
    _

// kernel: forward.7
$region0: #{forward.7}
  #allocation0 [shape = 'u32[]', space=smem, size = 0x4, offset = 0x4, fixed_abs, tag = 'smem constant byte address 0x4 - core index']
  #allocation1 [shape = 'u32[72,128]{1,0:T(1,128)}', space=vmem, size = 0x9000, scoped, tag = 'internal scratch']
  %s0 = inlined_call_operand.vmem [shape: bf16[2,512], index: 0, kind: input, shape index: {}]
  %s1 = inlined_call_operand.vmem [shape: bf16[512,128], index: 1, kind: input, shape index: {}]
  %s2 = inlined_call_operand.vmem [shape: f32[2,128], index: 2, kind: output, shape index: {}]
  %s3 = sld [smem:[#allocation0]]
  $region18: #{forward.7} parent=0
    _
  %s5 = ssub.s32 1, %s3
  %s6 = scalar_select 0, %s5, %s3
  // Predicated region
  $region2: #{forward.7} parent=0 // pred_check
    _
  $region3: #{forward.7} parent=0 // pred_check_branch
    %8 = sbr.rel (0) target = $region5
  $region4: #{forward.7} parent=0 // pred_region
    _
  $region5: #{forward.7} parent=0 // pred_fallthru
    _
  // Predicated region
  $region6: #{forward.7} parent=0 // pred_check
    _
  $region7: #{forward.7} parent=0 // pred_check_branch
    %10 = sbr.rel (0) target = $region9
  $region8: #{forward.7} parent=0 // pred_region
    _
  $region9: #{forward.7} parent=0 // pred_fallthru
    _
  %v11 = vld [vmem:[%s0] sm:$0xf]
  %v12 = vld [vmem:[%s1] sm:$0xf]
  %v13 = vld [vmem:[%s1 + $0x4] sm:$0xf]
  %v14 = vld [vmem:[%s1 + $0x8] sm:$0xf]
  %v15 = vld [vmem:[%s1 + $0xc] sm:$0xf]
  %v16 = vld [vmem:[%s1 + $0x10] sm:$0xf]
  %v17 = vld [vmem:[%s1 + $0x14] sm:$0xf]
  %v18 = vld [vmem:[%s1 + $0x18] sm:$0xf]
  %v19 = vld [vmem:[%s1 + $0x1c] sm:$0xf]
  %v20 = vld [vmem:[%s1 + $0x20] sm:$0xf]
  %v21 = vld [vmem:[%s1 + $0x24] sm:$0xf]
  %v22 = vld [vmem:[%s1 + $0x28] sm:$0xf]
  %v23 = vld [vmem:[%s1 + $0x2c] sm:$0xf]
  %v24 = vld [vmem:[%s1 + $0x30] sm:$0xf]
  %v25 = vld [vmem:[%s1 + $0x34] sm:$0xf]
  %v26 = vld [vmem:[%s1 + $0x38] sm:$0xf]
  %v27 = vld [vmem:[%s1 + $0x3c] sm:$0xf]
  %v28 = vld [vmem:[%s1 + $0x40] sm:$0xf]
  %v29 = vld [vmem:[%s1 + $0x44] sm:$0xf]
  %v30 = vld [vmem:[%s1 + $0x48] sm:$0xf]
  %v31 = vld [vmem:[%s1 + $0x4c] sm:$0xf]
  %v32 = vld [vmem:[%s1 + $0x50] sm:$0xf]
  %v33 = vld [vmem:[%s1 + $0x54] sm:$0xf]
  %v34 = vld [vmem:[%s1 + $0x58] sm:$0xf]
  %v35 = vld [vmem:[%s1 + $0x5c] sm:$0xf]
  %v36 = vld [vmem:[%s1 + $0x60] sm:$0xf]
  %v37 = vld [vmem:[%s1 + $0x64] sm:$0xf]
  %v38 = vld [vmem:[%s1 + $0x68] sm:$0xf]
  %v39 = vld [vmem:[%s1 + $0x6c] sm:$0xf]
  %v40 = vld [vmem:[%s1 + $0x70] sm:$0xf]
  %v41 = vld [vmem:[%s1 + $0x74] sm:$0xf]
  %v42 = vld [vmem:[%s1 + $0x78] sm:$0xf]
  %v43 = vld [vmem:[%s1 + $0x7c] sm:$0xf]
  %v44 = vld [vmem:[%s1 + $0x80] sm:$0xf]
  %v45 = vld [vmem:[%s1 + $0x84] sm:$0xf]
  %v46 = vld [vmem:[%s1 + $0x88] sm:$0xf]
  %v47 = vld [vmem:[%s1 + $0x8c] sm:$0xf]
  %v48 = vld [vmem:[%s1 + $0x90] sm:$0xf]
  %v49 = vld [vmem:[%s1 + $0x94] sm:$0xf]
  %v50 = vld [vmem:[%s1 + $0x98] sm:$0xf]
  %v51 = vld [vmem:[%s1 + $0x9c] sm:$0xf]
  %v52 = vld [vmem:[%s1 + $0xa0] sm:$0xf]
  %v53 = vld [vmem:[%s1 + $0xa4] sm:$0xf]
  %v54 = vld [vmem:[%s1 + $0xa8] sm:$0xf]
  %v55 = vld [vmem:[%s1 + $0xac] sm:$0xf]
  %v56 = vld [vmem:[%s1 + $0xb0] sm:$0xf]
  %v57 = vld [vmem:[%s1 + $0xb4] sm:$0xf]
  %v58 = vld [vmem:[%s1 + $0xb8] sm:$0xf]
  %v59 = vld [vmem:[%s1 + $0xbc] sm:$0xf]
  %v60 = vld [vmem:[%s1 + $0xc0] sm:$0xf]
  %v61 = vld [vmem:[%s1 + $0xc4] sm:$0xf]
  %v62 = vld [vmem:[%s1 + $0xc8] sm:$0xf]
  %v63 = vld [vmem:[%s1 + $0xcc] sm:$0xf]
  %v64 = vld [vmem:[%s1 + $0xd0] sm:$0xf]
  %v65 = vld [vmem:[%s1 + $0xd4] sm:$0xf]
  %v66 = vld [vmem:[%s1 + $0xd8] sm:$0xf]
  %v67 = vld [vmem:[%s1 + $0xdc] sm:$0xf]
  %v68 = vld [vmem:[%s1 + $0xe0] sm:$0xf]
  %v69 = vld [vmem:[%s1 + $0xe4] sm:$0xf]
  %v70 = vld [vmem:[%s1 + $0xe8] sm:$0xf]
  %v71 = vld [vmem:[%s1 + $0xec] sm:$0xf]
  %v72 = vld [vmem:[%s1 + $0xf0] sm:$0xf]
  %v73 = vld [vmem:[%s1 + $0xf4] sm:$0xf]
  %v74 = vld [vmem:[%s1 + $0xf8] sm:$0xf]
  %v75 = vld [vmem:[%s1 + $0xfc] sm:$0xf]
  %77 = vst [vmem:[#allocation1] ss:$9 sm:$0xff] %v11
  %v78 = vld [vmem:[#allocation1] sm:$0xff]
  %v79 = vld [vmem:[#allocation1 + $0x9] sm:$0xff]
  %v80 = vld [vmem:[#allocation1 + $0x12] sm:$0xff]
  %v81 = vld [vmem:[#allocation1 + $0x1b] sm:$0xff]
  %v150 = vunpack.c.l.b16 %v12
  %v151 = vunpack.c.l.b16 %v13
  %v152 = vunpack.c.l.b16 %v14
  %v153 = vunpack.c.l.b16 %v15
  %v154 = vunpack.c.l.b16 %v16
  %v155 = vunpack.c.l.b16 %v17
  %v156 = vunpack.c.l.b16 %v18
  %v157 = vunpack.c.l.b16 %v19
  %v158 = vunpack.c.l.b16 %v20
  %v159 = vunpack.c.l.b16 %v21
  %v160 = vunpack.c.l.b16 %v22
  %v161 = vunpack.c.l.b16 %v23
  %v162 = vunpack.c.l.b16 %v24
  %v163 = vunpack.c.l.b16 %v25
  %v164 = vunpack.c.l.b16 %v26
  %v165 = vunpack.c.l.b16 %v27
  %v166 = vunpack.c.l.b16 %v28
  %v167 = vunpack.c.l.b16 %v29
  %v168 = vunpack.c.l.b16 %v30
  %v169 = vunpack.c.l.b16 %v31
  %v170 = vunpack.c.l.b16 %v32
  %v171 = vunpack.c.l.b16 %v33
  %v172 = vunpack.c.l.b16 %v34
  %v173 = vunpack.c.l.b16 %v35
  %v174 = vunpack.c.l.b16 %v36
  %v175 = vunpack.c.l.b16 %v37
  %v176 = vunpack.c.l.b16 %v38
  %v177 = vunpack.c.l.b16 %v39
  %v178 = vunpack.c.l.b16 %v40
  %v179 = vunpack.c.l.b16 %v41
  %v180 = vunpack.c.l.b16 %v42
  %v181 = vunpack.c.l.b16 %v43
  %v182 = vunpack.c.l.b16 %v44
  %v183 = vunpack.c.l.b16 %v45
  %v184 = vunpack.c.l.b16 %v46
  %v185 = vunpack.c.l.b16 %v47
  %v186 = vunpack.c.l.b16 %v48
  %v187 = vunpack.c.l.b16 %v49
  %v188 = vunpack.c.l.b16 %v50
  %v189 = vunpack.c.l.b16 %v51
  %v190 = vunpack.c.l.b16 %v52
  %v191 = vunpack.c.l.b16 %v53
  %v192 = vunpack.c.l.b16 %v54
  %v193 = vunpack.c.l.b16 %v55
  %v194 = vunpack.c.l.b16 %v56
  %v195 = vunpack.c.l.b16 %v57
  %v196 = vunpack.c.l.b16 %v58
  %v197 = vunpack.c.l.b16 %v59
  %v198 = vunpack.c.l.b16 %v60
  %v199 = vunpack.c.l.b16 %v61
  %v200 = vunpack.c.l.b16 %v62
  %v201 = vunpack.c.l.b16 %v63
  %v202 = vunpack.c.l.b16 %v64
  %v203 = vunpack.c.l.b16 %v65
  %v204 = vunpack.c.l.b16 %v66
  %v205 = vunpack.c.l.b16 %v67
  %v206 = vunpack.c.l.b16 %v68
  %v207 = vunpack.c.l.b16 %v69
  %v208 = vunpack.c.l.b16 %v70
  %v209 = vunpack.c.l.b16 %v71
  %v210 = vunpack.c.l.b16 %v72
  %v211 = vunpack.c.l.b16 %v73
  %v212 = vunpack.c.l.b16 %v74
  %v213 = vunpack.c.l.b16 %v75
  %v214 = vpack.c.b16 %v151, %v150
  %v215 = vpack.c.b16 %v153, %v152
  %v216 = vpack.c.b16 %v155, %v154
  %v217 = vpack.c.b16 %v157, %v156
  %v218 = vpack.c.b16 %v159, %v158
  %v219 = vpack.c.b16 %v161, %v160
  %v220 = vpack.c.b16 %v163, %v162
  %v221 = vpack.c.b16 %v165, %v164
  %v222 = vpack.c.b16 %v167, %v166
  %v223 = vpack.c.b16 %v169, %v168
  %v224 = vpack.c.b16 %v171, %v170
  %v225 = vpack.c.b16 %v173, %v172
  %v226 = vpack.c.b16 %v175, %v174
  %v227 = vpack.c.b16 %v177, %v176
  %v228 = vpack.c.b16 %v179, %v178
  %v229 = vpack.c.b16 %v181, %v180
  %v230 = vpack.c.b16 %v183, %v182
  %v231 = vpack.c.b16 %v185, %v184
  %v232 = vpack.c.b16 %v187, %v186
  %v233 = vpack.c.b16 %v189, %v188
  %v234 = vpack.c.b16 %v191, %v190
  %v235 = vpack.c.b16 %v193, %v192
  %v236 = vpack.c.b16 %v195, %v194
  %v237 = vpack.c.b16 %v197, %v196
  %v238 = vpack.c.b16 %v199, %v198
  %v239 = vpack.c.b16 %v201, %v200
  %v240 = vpack.c.b16 %v203, %v202
  %v241 = vpack.c.b16 %v205, %v204
  %v242 = vpack.c.b16 %v207, %v206
  %v243 = vpack.c.b16 %v209, %v208
  %v244 = vpack.c.b16 %v211, %v210
  %v245 = vpack.c.b16 %v213, %v212
  %278 = vmatpush.bf16.msra.mxu0 %v221
  %279 = vmatpush.bf16.msra.mxu0 %v220
  %280 = vmatpush.bf16.msra.mxu0 %v219
  %281 = vmatpush.bf16.msra.mxu0 %v218
  %282 = vmatpush.bf16.msra.mxu0 %v217
  %283 = vmatpush.bf16.msra.mxu0 %v216
  %284 = vmatpush.bf16.msra.mxu0 %v215
  %285 = vmatpush.bf16.msra.mxu0 %v214
  %286 = vmatmul.bf16.gmra.mxu0 %v78
  %v287 = vpop.f32.mrf.mxu0
  %v288 = vadd.f32 0.0, %v287
  %v289 = vpop.f32.mrf.mxu0
  %290 = vdwg.mxu0
  %291 = vmatpush.bf16.msra.mxu0 %v229
  %292 = vmatpush.bf16.msra.mxu0 %v228
  %293 = vmatpush.bf16.msra.mxu0 %v227
  %294 = vmatpush.bf16.msra.mxu0 %v226
  %295 = vmatpush.bf16.msra.mxu0 %v225
  %296 = vmatpush.bf16.msra.mxu0 %v224
  %297 = vmatpush.bf16.msra.mxu0 %v223
  %298 = vmatpush.bf16.msra.mxu0 %v222
  %299 = vmatmul.bf16.gmra.mxu0 %v79
  %v300 = vpop.f32.mrf.mxu0
  %v301 = vadd.f32 %v288, %v300
  %v302 = vpop.f32.mrf.mxu0
  %303 = vdwg.mxu0
  %304 = vmatpush.bf16.msra.mxu0 %v237
  %305 = vmatpush.bf16.msra.mxu0 %v236
  %306 = vmatpush.bf16.msra.mxu0 %v235
  %307 = vmatpush.bf16.msra.mxu0 %v234
  %308 = vmatpush.bf16.msra.mxu0 %v233
  %309 = vmatpush.bf16.msra.mxu0 %v232
  %310 = vmatpush.bf16.msra.mxu0 %v231
  %311 = vmatpush.bf16.msra.mxu0 %v230
  %312 = vmatmul.bf16.gmra.mxu0 %v80
  %v313 = vpop.f32.mrf.mxu0
  %v314 = vadd.f32 %v301, %v313
  %v315 = vpop.f32.mrf.mxu0
  %316 = vdwg.mxu0
  %317 = vmatpush.bf16.msra.mxu0 %v245
  %318 = vmatpush.bf16.msra.mxu0 %v244
  %319 = vmatpush.bf16.msra.mxu0 %v243
  %320 = vmatpush.bf16.msra.mxu0 %v242
  %321 = vmatpush.bf16.msra.mxu0 %v241
  %322 = vmatpush.bf16.msra.mxu0 %v240
  %323 = vmatpush.bf16.msra.mxu0 %v239
  %324 = vmatpush.bf16.msra.mxu0 %v238
  %325 = vmatmul.bf16.gmra.mxu0 %v81
  %v326 = vpop.f32.mrf.mxu0
  %v327 = vadd.f32 %v314, %v326
  %v328 = vpop.f32.mrf.mxu0
  %329 = vdwg.mxu0
  %v330 = vand.u32 2147483647, %v327
  %v331 = vsub.f32 0.0, %v330
  %v332 = vmul.f32 %v331, 1.442695
  %v333 = vpow.pop %v332
  %vm334 = vcmp.ge.f32.partialorder %v327, 0.0
  %v335 = vadd.f32 %v333, 1.0
  %v336 = vrcp.pop %v335
  %v337 = vmul.f32 %v335, %v336
  %v338 = vsub.f32 1.0, %v337
  %v339 = vmul.f32 %v336, %v338
  %v340 = vadd.f32 %v336, %v339
  %vm341 = vweird.f32 %v335
  %vm342 = vweird.f32 %v336
  %vm343 = vmor %vm341, %vm342
  %v344 = vsel %vm343, %v336, %v340
  %v345 = vand.u32 2147483647, %v335
  %vm346 = vcmp.eq.f32.partialorder %v345, 8.507059e+37
  %v347 = vand.u32 %v335, 2147483648
  %v348 = vor.u32 1.1754944e-38, %v347
  %v349 = vsel %vm346, %v348, %v344
  %v350 = vmul.f32 1.0, %v349
  %v351 = vmul.f32 %v333, %v349
  %v352 = vsel %vm334, %v350, %v351
  %353 = vst [vmem:[%s2] sm:$0x3] %v352
  // Predicated region
  $region10: #{forward.7} parent=0 // pred_check
    _
  $region11: #{forward.7} parent=0 // pred_check_branch
    %355 = sbr.rel (0) target = $region13
  $region12: #{forward.7} parent=0 // pred_region
    _
  $region13: #{forward.7} parent=0 // pred_fallthru
    _
  // Predicated region
  $region14: #{forward.7} parent=0 // pred_check
    _
  $region15: #{forward.7} parent=0 // pred_check_branch
    %357 = sbr.rel (0) target = $region17
  $region16: #{forward.7} parent=0 // pred_region
    _
  $region17: #{forward.7} parent=0 // pred_fallthru
    _

</llo_original>
